<compile_context>
chip_gen: v7x
topology: tpu7x:2x2x1
jax: 0.10.0
libtpu: 0.0.40
codegen_flags: <defaults>
</compile_context>

<pallas_src>
import functools

import numpy as np

import jax
import jax.numpy as jnp
from jax.experimental import pallas as pl
from jax.experimental.pallas import tpu as pltpu


# ---------------------------------------------------------------------------
# Helpers
# ---------------------------------------------------------------------------
def _round_up(v, m):
    return (v + m - 1) // m * m


def _pad2d(x, rows, cols, dtype):
    x = x.astype(dtype)
    r, c = x.shape
    return jnp.pad(x, ((0, rows - r), (0, cols - c)))


# ---------------------------------------------------------------------------
# Fused kernel: all four GCNConv layers in one invocation, VMEM-resident.
# ---------------------------------------------------------------------------
def _gcn_fused_kernel(a_ref, x_ref,
                      w1_ref, b1_ref, w2_ref, b2_ref,
                      w3_ref, b3_ref, w4_ref, b4_ref,
                      o_ref, *, a_first, compute_dtype):
    a = a_ref[...]  # (Mp, Mp), already stored in compute_dtype (HBM-side cast)

    def conv(h, w_ref, b_ref, relu, first):
        w = w_ref[...]                       # compute_dtype
        hc = h.astype(compute_dtype)
        if first:
            # (A @ H) @ W : cheaper when F_in_pad < F_out_pad
            t = jnp.dot(a, hc, preferred_element_type=jnp.float32)
            out = jnp.dot(t.astype(compute_dtype), w,
                          preferred_element_type=jnp.float32)
        else:
            # A @ (H @ W) : cheaper when F_out_pad <= F_in_pad
            t = jnp.dot(hc, w, preferred_element_type=jnp.float32)
            out = jnp.dot(a, t.astype(compute_dtype),
                          preferred_element_type=jnp.float32)
        out = out + b_ref[...]               # bias add (+ ReLU) stay f32 on VPU
        if relu:
            out = jnp.maximum(out, 0.0)
        return out

    h = x_ref[...]
    h = conv(h, w1_ref, b1_ref, relu=True,  first=a_first[0])
    h = conv(h, w2_ref, b2_ref, relu=True,  first=a_first[1])
    h = conv(h, w3_ref, b3_ref, relu=False, first=a_first[2])
    h = conv(h, w4_ref, b4_ref, relu=False, first=a_first[3])
    o_ref[...] = h.astype(o_ref.dtype)


def _gcn_forward_fused(x, a_hat, params, compute_dtype):
    M, F0 = x.shape
    dims = [F0] + [w.shape[1] for (w, _) in params]        # [F0,256,128,64,C]
    pdims = [_round_up(d, 128) for d in dims]               # lane-dense padding
    Mp = _round_up(M, 128)                                   # lane+sublane aligned

    a_first = tuple(pdims[i] < pdims[i + 1] for i in range(4))
    csize = np.dtype(compute_dtype).itemsize

    a_p = _pad2d(a_hat, Mp, Mp, compute_dtype)
    x_p = _pad2d(x, Mp, pdims[0], compute_dtype)
    ops = [a_p, x_p]
    for i, (w, b) in enumerate(params):
        ops.append(_pad2d(w, pdims[i], pdims[i + 1], compute_dtype))
        ops.append(_pad2d(b.reshape(1, -1), 1, pdims[i + 1], jnp.float32))

    # Advisory cost estimate for XLA scheduling around the custom call.
    flops = 0
    for i in range(4):
        a_width = min(pdims[i], pdims[i + 1])   # width of A_hat matmul after reorder
        flops += 2 * Mp * Mp * a_width + 2 * Mp * pdims[i] * pdims[i + 1]
    bytes_accessed = sum(int(o.size) * o.dtype.itemsize for o in ops)
    bytes_accessed += Mp * pdims[-1] * 4

    # Scoped-VMEM sizing from padded operands (+ f32 intermediates) with headroom.
    work = (Mp * Mp * csize
            + Mp * pdims[0] * csize
            + sum(pdims[i] * pdims[i + 1] * csize + pdims[i + 1] * 4
                  for i in range(4))
            + 3 * Mp * max(pdims) * 4
            + Mp * pdims[-1] * 4)
    vmem_limit = min(96 << 20, max(32 << 20, int(1.5 * work)))

    kernel = functools.partial(_gcn_fused_kernel, a_first=a_first,
                               compute_dtype=compute_dtype)
    out_p = pl.pallas_call(
        kernel,
        out_shape=jax.ShapeDtypeStruct((Mp, pdims[-1]), jnp.float32),
        in_specs=[pl.BlockSpec(memory_space=pltpu.MemorySpace.VMEM)] * len(ops),
        out_specs=pl.BlockSpec(memory_space=pltpu.MemorySpace.VMEM),
        compiler_params=pltpu.CompilerParams(vmem_limit_bytes=vmem_limit),
        cost_estimate=pl.CostEstimate(flops=int(flops), transcendentals=0,
                                      bytes_accessed=int(bytes_accessed)),
    )(*ops)

    return out_p[:M, :dims[-1]]


# ---------------------------------------------------------------------------
# Row-tiled streaming path (large graphs): per-layer pallas_call, A_hat
# streamed in (row_tile, Mp) tiles with a "parallel" M grid axis.
# ---------------------------------------------------------------------------
def _xw_tiled_kernel(h_ref, w_ref, o_ref):
    # T_tile = H_tile @ W     (f32 accumulation, stored in compute_dtype)
    o_ref[...] = jnp.dot(h_ref[...], w_ref[...],
                         preferred_element_type=jnp.float32).astype(o_ref.dtype)


def _rowtiled_aHw_kernel(a_ref, h_ref, w_ref, b_ref, o_ref, *, relu,
                         compute_dtype):
    # out_tile = relu?((A_tile @ H) @ W + b)     -- used when F_in_pad < F_out_pad
    t = jnp.dot(a_ref[...], h_ref[...], preferred_element_type=jnp.float32)
    out = jnp.dot(t.astype(compute_dtype), w_ref[...],
                  preferred_element_type=jnp.float32) + b_ref[...]
    if relu:
        out = jnp.maximum(out, 0.0)
    o_ref[...] = out.astype(o_ref.dtype)


def _rowtiled_aT_kernel(a_ref, t_ref, b_ref, o_ref, *, relu):
    # out_tile = relu?(A_tile @ T + b),  T = H @ W precomputed (row-tiled)
    out = jnp.dot(a_ref[...], t_ref[...],
                  preferred_element_type=jnp.float32) + b_ref[...]
    if relu:
        out = jnp.maximum(out, 0.0)
    o_ref[...] = out.astype(o_ref.dtype)


def _gcn_forward_tiled(x, a_hat, params, compute_dtype, row_tile):
    M, F0 = x.shape
    dims = [F0] + [w.shape[1] for (w, _) in params]
    pdims = [_round_up(d, 128) for d in dims]
    row_tile = max(128, _round_up(row_tile, 128))
    Mp = _round_up(M, row_tile)
    grid_m = Mp // row_tile
    csize = np.dtype(compute_dtype).itemsize

    a_p = _pad2d(a_hat, Mp, Mp, compute_dtype)       # bf16/f32 on HBM side
    h = _pad2d(x, Mp, pdims[0], jnp.float32)         # intermediates kept f32

    for i, (w, b) in enumerate(params):
        fin, fout = pdims[i], pdims[i + 1]
        relu = i < 2
        a_first = fin < fout
        w_p = _pad2d(w, fin, fout, compute_dtype)
        b_p = _pad2d(b.reshape(1, -1), 1, fout, jnp.float32)
        h_c = h.astype(compute_dtype)                # MXU operand dtype

        if a_first:
            kernel = functools.partial(_rowtiled_aHw_kernel, relu=relu,
                                       compute_dtype=compute_dtype)
            ops = [a_p, h_c, w_p, b_p]
            in_specs = [
                pl.BlockSpec((row_tile, Mp), lambda m: (m, 0)),   # streamed A rows
                pl.BlockSpec((Mp, fin), lambda m: (0, 0)),        # resident H
                pl.BlockSpec((fin, fout), lambda m: (0, 0)),      # resident W
                pl.BlockSpec((1, fout), lambda m: (0, 0)),        # resident b
            ]
            flops = 2 * Mp * Mp * fin + 2 * Mp * fin * fout
            resident = Mp * fin * csize + fin * fout * csize + fout * 4
        else:
            # Precompute T = H @ W once (row-tiled), then stream A_tile @ T + b.
            t = pl.pallas_call(
                _xw_tiled_kernel,
                out_shape=jax.ShapeDtypeStruct((Mp, fout), compute_dtype),
                grid=(grid_m,),
                in_specs=[pl.BlockSpec((row_tile, fin), lambda m: (m, 0)),
                          pl.BlockSpec((fin, fout), lambda m: (0, 0))],
                out_specs=pl.BlockSpec((row_tile, fout), lambda m: (m, 0)),
                compiler_params=pltpu.CompilerParams(
                    dimension_semantics=("parallel",)),
                cost_estimate=pl.CostEstimate(
                    flops=int(2 * Mp * fin * fout), transcendentals=0,
                    bytes_accessed=int(Mp * fin * csize + fin * fout * csize
                                       + Mp * fout * csize)),
            )(h_c, w_p)
            kernel = functools.partial(_rowtiled_aT_kernel, relu=relu)
            ops = [a_p, t, b_p]
            in_specs = [
                pl.BlockSpec((row_tile, Mp), lambda m: (m, 0)),
                pl.BlockSpec((Mp, fout), lambda m: (0, 0)),
                pl.BlockSpec((1, fout), lambda m: (0, 0)),
            ]
            flops = 2 * Mp * Mp * fout
            resident = Mp * fout * csize + fout * 4

        bytes_accessed = (Mp * Mp * csize + resident + Mp * fout * 4)
        vmem_limit = min(96 << 20,
                         max(32 << 20,
                             int(1.5 * (2 * row_tile * Mp * csize     # A double-buffer
                                        + resident
                                        + 2 * row_tile * fout * 4     # out double-buffer
                                        + 2 * row_tile * max(fin, fout) * 4))))

        h = pl.pallas_call(
            kernel,
            out_shape=jax.ShapeDtypeStruct((Mp, fout), jnp.float32),
            grid=(grid_m,),
            in_specs=in_specs,
            out_specs=pl.BlockSpec((row_tile, fout), lambda m: (m, 0)),
            compiler_params=pltpu.CompilerParams(
                dimension_semantics=("parallel",),
                vmem_limit_bytes=vmem_limit),
            cost_estimate=pl.CostEstimate(flops=int(flops), transcendentals=0,
                                          bytes_accessed=int(bytes_accessed)),
        )(*ops)

    return h[:M, :dims[-1]]


# ---------------------------------------------------------------------------
# Public entry point
# ---------------------------------------------------------------------------
def gcn_forward(x, a_hat, params, *, compute_dtype=None, row_tile=256,
                force_tiled=False):
    """GCN forward. x:(M,F0), a_hat:(M,M) normalized adjacency, params: 4x(W,b)."""
    M = x.shape[0]
    if compute_dtype is None:
        # bf16 MXU operands (f32 accumulation) for non-toy graphs on all gens.
        compute_dtype = jnp.float32 if M <= 512 else jnp.bfloat16

    dims = [x.shape[1]] + [w.shape[1] for (w, _) in params]
    pdims = [_round_up(d, 128) for d in dims]
    Mp = _round_up(M, 128)
    csize = np.dtype(compute_dtype).itemsize
    fused_bytes = (Mp * Mp * csize + Mp * pdims[0] * csize
                   + sum(pdims[i] * pdims[i + 1] * csize for i in range(4))
                   + 3 * Mp * max(pdims) * 4)

    # Keep the fused single-call design while everything fits comfortably in
    # VMEM (toy sizes); stream A_hat row tiles otherwise (v7x 64 MiB VMEM).
    if force_tiled or fused_bytes > (32 << 20):
        return _gcn_forward_tiled(x, a_hat, params, compute_dtype, row_tile)
    return _gcn_forward_fused(x, a_hat, params, compute_dtype)


# ---------------------------------------------------------------------------
# Glue: normalized adjacency (PyG gcn_norm, improved=True), params, reference.
# ---------------------------------------------------------------------------
def build_norm_adj(edge_index, num_nodes):
    """A_hat = D^{-1/2} (A + 2I) D^{-1/2}; A[dst, src] = 1 for each edge."""
    src = edge_index[0]
    dst = edge_index[1]
    a = jnp.zeros((num_nodes, num_nodes), jnp.float32)
    a = a.at[dst, src].add(1.0)
    a = a + 2.0 * jnp.eye(num_nodes, dtype=jnp.float32)   # improved=True
    deg = a.sum(axis=1)
    dinv = jnp.where(deg > 0.0, 1.0 / jnp.sqrt(deg), 0.0)
    return dinv[:, None] * a * dinv[None, :]


def glorot(key, fan_in, fan_out):
    limit = jnp.sqrt(6.0 / (fan_in + fan_out))
    return jax.random.uniform(key, (fan_in, fan_out), jnp.float32,
                              minval=-limit, maxval=limit)


def init_gcn_params(key, num_node_features, num_classes):
    dims = [num_node_features, 256, 128, 64, num_classes]
    params = []
    for i in range(4):
        key, wk = jax.random.split(key)
        w = glorot(wk, dims[i], dims[i + 1])
        b = jnp.zeros((dims[i + 1],), jnp.float32)
        params.append((w, b))
    return params


def gcn_forward_ref(x, a_hat, params):
    h = x
    for i, (w, b) in enumerate(params):
        h = a_hat @ (h @ w) + b
        if i < 2:
            h = jnp.maximum(h, 0.0)
    return h


# ---------------------------------------------------------------------------
if __name__ == "__main__":
    key = jax.random.PRNGKey(0)

    # --- toy config (spec-consistent shapes): fused single-call f32 path -----
    num_nodes, num_node_features, num_classes, num_edges = 128, 16, 8, 512
    key, kx, ke, kp = jax.random.split(key, 4)
    x = jax.random.normal(kx, (num_nodes, num_node_features), jnp.float32)
    edge_index = jax.random.randint(ke, (2, num_edges), 0, num_nodes, jnp.int32)
    a_hat = build_norm_adj(edge_index, num_nodes)
    params = init_gcn_params(kp, num_node_features, num_classes)

    out = jax.block_until_ready(gcn_forward(x, a_hat, params))
    ref = gcn_forward_ref(x, a_hat, params)
    assert out.shape == (num_nodes, num_classes), out.shape
    assert jnp.allclose(out, ref, atol=1e-3, rtol=1e-3), "fused f32 mismatch"

    # --- exercise the row-tiled streaming path (f32, multi-tile grid) --------
    num_nodes2, num_edges2 = 300, 1200
    key, kx2, ke2, kp2 = jax.random.split(key, 4)
    x2 = jax.random.normal(kx2, (num_nodes2, num_node_features), jnp.float32)
    edge_index2 = jax.random.randint(ke2, (2, num_edges2), 0, num_nodes2,
                                     jnp.int32)
    a_hat2 = build_norm_adj(edge_index2, num_nodes2)
    params2 = init_gcn_params(kp2, num_node_features, num_classes)

    out2 = jax.block_until_ready(
        gcn_forward(x2, a_hat2, params2, compute_dtype=jnp.float32,
                    row_tile=128, force_tiled=True))
    ref2 = gcn_forward_ref(x2, a_hat2, params2)
    assert out2.shape == (num_nodes2, num_classes), out2.shape
    assert jnp.allclose(out2, ref2, atol=1e-3, rtol=1e-3), "tiled f32 mismatch"

    # --- bf16 MXU operands (f32 accumulation), loose tolerance ---------------
    out3 = jax.block_until_ready(
        gcn_forward(x2, a_hat2, params2, compute_dtype=jnp.bfloat16,
                    row_tile=128, force_tiled=True))
    assert jnp.allclose(out3, ref2, atol=0.2, rtol=0.2), "tiled bf16 mismatch"

    print("KERNEL_OK")
</pallas_src>

<mosaic_0001>
module attributes {stable_mosaic.version = 11 : i64} {
  func.func @_gcn_fused_kernel(%arg0: memref<128x128xf32, #tpu.memory_space<vmem>>, %arg1: memref<128x128xf32, #tpu.memory_space<vmem>>, %arg2: memref<128x256xf32, #tpu.memory_space<vmem>>, %arg3: memref<1x256xf32, #tpu.memory_space<vmem>>, %arg4: memref<256x128xf32, #tpu.memory_space<vmem>>, %arg5: memref<1x128xf32, #tpu.memory_space<vmem>>, %arg6: memref<128x128xf32, #tpu.memory_space<vmem>>, %arg7: memref<1x128xf32, #tpu.memory_space<vmem>>, %arg8: memref<128x128xf32, #tpu.memory_space<vmem>>, %arg9: memref<1x128xf32, #tpu.memory_space<vmem>>, %arg10: memref<128x128xf32, #tpu.memory_space<vmem>>) attributes {dimension_semantics = [], scalar_prefetch = 0 : i64, scratch_operands = 0 : i64, tpu.core_type = #tpu.core_type<tc>} {
    %c0 = arith.constant 0 : index
    %c0_0 = arith.constant 0 : index
    %0 = vector.load %arg0[%c0, %c0_0] : memref<128x128xf32, #tpu.memory_space<vmem>>, vector<128x128xf32>
    %c0_1 = arith.constant 0 : index
    %c0_2 = arith.constant 0 : index
    %1 = vector.load %arg1[%c0_1, %c0_2] : memref<128x128xf32, #tpu.memory_space<vmem>>, vector<128x128xf32>
    %c0_3 = arith.constant 0 : index
    %c0_4 = arith.constant 0 : index
    %2 = vector.load %arg2[%c0_3, %c0_4] : memref<128x256xf32, #tpu.memory_space<vmem>>, vector<128x256xf32>
    %cst = arith.constant dense<0.000000e+00> : vector<128x128xf32>
    %3 = tpu.matmul %0, %1, %cst {dimension_numbers = #tpu.dot_dimension_numbers<[1], [0], [0], [1], [0, 0, 1, 1], [], []>} : vector<128x128xf32>, vector<128x128xf32>, vector<128x128xf32> -> vector<128x128xf32>
    %cst_5 = arith.constant dense<0.000000e+00> : vector<128x256xf32>
    %4 = tpu.matmul %3, %2, %cst_5 {dimension_numbers = #tpu.dot_dimension_numbers<[1], [0], [0], [1], [0, 0, 1, 1], [], []>} : vector<128x128xf32>, vector<128x256xf32>, vector<128x256xf32> -> vector<128x256xf32>
    %c0_6 = arith.constant 0 : index
    %c0_7 = arith.constant 0 : index
    %5 = vector.load %arg3[%c0_6, %c0_7] : memref<1x256xf32, #tpu.memory_space<vmem>>, vector<1x256xf32>
    %6 = vector.broadcast %5 : vector<1x256xf32> to vector<128x256xf32>
    %7 = arith.addf %4, %6 : vector<128x256xf32>
    %cst_8 = arith.constant 0.000000e+00 : f32
    %8 = vector.broadcast %cst_8 : f32 to vector<128x256xf32>
    %9 = arith.maximumf %7, %8 : vector<128x256xf32>
    %c0_9 = arith.constant 0 : index
    %c0_10 = arith.constant 0 : index
    %10 = vector.load %arg4[%c0_9, %c0_10] : memref<256x128xf32, #tpu.memory_space<vmem>>, vector<256x128xf32>
    %cst_11 = arith.constant dense<0.000000e+00> : vector<128x128xf32>
    %11 = tpu.matmul %9, %10, %cst_11 {dimension_numbers = #tpu.dot_dimension_numbers<[1], [0], [0], [1], [0, 0, 1, 1], [], []>} : vector<128x256xf32>, vector<256x128xf32>, vector<128x128xf32> -> vector<128x128xf32>
    %cst_12 = arith.constant dense<0.000000e+00> : vector<128x128xf32>
    %12 = tpu.matmul %0, %11, %cst_12 {dimension_numbers = #tpu.dot_dimension_numbers<[1], [0], [0], [1], [0, 0, 1, 1], [], []>} : vector<128x128xf32>, vector<128x128xf32>, vector<128x128xf32> -> vector<128x128xf32>
    %c0_13 = arith.constant 0 : index
    %c0_14 = arith.constant 0 : index
    %13 = vector.load %arg5[%c0_13, %c0_14] : memref<1x128xf32, #tpu.memory_space<vmem>>, vector<1x128xf32>
    %14 = vector.broadcast %13 : vector<1x128xf32> to vector<128x128xf32>
    %15 = arith.addf %12, %14 : vector<128x128xf32>
    %cst_15 = arith.constant 0.000000e+00 : f32
    %16 = vector.broadcast %cst_15 : f32 to vector<128x128xf32>
    %17 = arith.maximumf %15, %16 : vector<128x128xf32>
    %c0_16 = arith.constant 0 : index
    %c0_17 = arith.constant 0 : index
    %18 = vector.load %arg6[%c0_16, %c0_17] : memref<128x128xf32, #tpu.memory_space<vmem>>, vector<128x128xf32>
    %cst_18 = arith.constant dense<0.000000e+00> : vector<128x128xf32>
    %19 = tpu.matmul %17, %18, %cst_18 {dimension_numbers = #tpu.dot_dimension_numbers<[1], [0], [0], [1], [0, 0, 1, 1], [], []>} : vector<128x128xf32>, vector<128x128xf32>, vector<128x128xf32> -> vector<128x128xf32>
    %cst_19 = arith.constant dense<0.000000e+00> : vector<128x128xf32>
    %20 = tpu.matmul %0, %19, %cst_19 {dimension_numbers = #tpu.dot_dimension_numbers<[1], [0], [0], [1], [0, 0, 1, 1], [], []>} : vector<128x128xf32>, vector<128x128xf32>, vector<128x128xf32> -> vector<128x128xf32>
    %c0_20 = arith.constant 0 : index
    %c0_21 = arith.constant 0 : index
    %21 = vector.load %arg7[%c0_20, %c0_21] : memref<1x128xf32, #tpu.memory_space<vmem>>, vector<1x128xf32>
    %22 = vector.broadcast %21 : vector<1x128xf32> to vector<128x128xf32>
    %23 = arith.addf %20, %22 : vector<128x128xf32>
    %c0_22 = arith.constant 0 : index
    %c0_23 = arith.constant 0 : index
    %24 = vector.load %arg8[%c0_22, %c0_23] : memref<128x128xf32, #tpu.memory_space<vmem>>, vector<128x128xf32>
    %cst_24 = arith.constant dense<0.000000e+00> : vector<128x128xf32>
    %25 = tpu.matmul %23, %24, %cst_24 {dimension_numbers = #tpu.dot_dimension_numbers<[1], [0], [0], [1], [0, 0, 1, 1], [], []>} : vector<128x128xf32>, vector<128x128xf32>, vector<128x128xf32> -> vector<128x128xf32>
    %cst_25 = arith.constant dense<0.000000e+00> : vector<128x128xf32>
    %26 = tpu.matmul %0, %25, %cst_25 {dimension_numbers = #tpu.dot_dimension_numbers<[1], [0], [0], [1], [0, 0, 1, 1], [], []>} : vector<128x128xf32>, vector<128x128xf32>, vector<128x128xf32> -> vector<128x128xf32>
    %c0_26 = arith.constant 0 : index
    %c0_27 = arith.constant 0 : index
    %27 = vector.load %arg9[%c0_26, %c0_27] : memref<1x128xf32, #tpu.memory_space<vmem>>, vector<1x128xf32>
    %28 = vector.broadcast %27 : vector<1x128xf32> to vector<128x128xf32>
    %29 = arith.addf %26, %28 : vector<128x128xf32>
    %c0_28 = arith.constant 0 : index
    %c0_29 = arith.constant 0 : index
    %30 = vector.load %arg10[%c0_28, %c0_29] : memref<128x128xf32, #tpu.memory_space<vmem>>, vector<128x128xf32>
    tpu.vector_store %arg10[%c0_28, %c0_29], %29 {strides = array<i32>} : memref<128x128xf32, #tpu.memory_space<vmem>>, vector<128x128xf32>,
    return
  }
}

</mosaic_0001>

<llo_original>
// kernel: tpu_custom_call.1
$region0: #{tpu_custom_call.1}
  #allocation0 [shape = 'u32[]', space=smem, size = 0x4, offset = 0x4, fixed_abs, tag = 'smem constant byte address 0x4 - core index']
  #allocation1 [shape = 'u32[144,128]{1,0:T(1,128)}', space=vmem, size = 0x12000, scoped, tag = 'internal scratch']
  %s0 = inlined_call_operand.hbm [shape: f32[128,128], index: 0, kind: input, shape index: {}]
  %s1 = inlined_call_operand.hbm [shape: f32[128,128], index: 1, kind: input, shape index: {}]
  %s2 = inlined_call_operand.hbm [shape: f32[128,256], index: 2, kind: input, shape index: {}]
  %s3 = inlined_call_operand.vmem [shape: f32[1,256], index: 3, kind: input, shape index: {}]
  %s4 = inlined_call_operand.hbm [shape: f32[256,128], index: 4, kind: input, shape index: {}]
  %s5 = inlined_call_operand.vmem [shape: f32[1,128], index: 5, kind: input, shape index: {}]
  %s6 = inlined_call_operand.hbm [shape: f32[128,128], index: 6, kind: input, shape index: {}]
  %s7 = inlined_call_operand.vmem [shape: f32[1,128], index: 7, kind: input, shape index: {}]
  %s8 = inlined_call_operand.hbm [shape: f32[128,128], index: 8, kind: input, shape index: {}]
  %s9 = inlined_call_operand.vmem [shape: f32[1,128], index: 9, kind: input, shape index: {}]
  %s10 = inlined_call_operand.hbm [shape: f32[128,128], index: 10, kind: output, shape index: {}]
  %s11 = sld [smem:[#allocation0]]
  $region74: #{tpu_custom_call.1} parent=0
    _
  %s13 = ssub.s32 1, %s11
  %s14 = scalar_select 0, %s13, %s11
  $region1: #{tpu_custom_call.1} parent=0
    #allocation2 [shape = 'u8[65536]{0}', space=vmem, size = 0x10000, scoped, tag = 'input window, operand 0, single buffered']
    #allocation3 [shape = 's32[1]{0}', space=sflag, size = 0x4, scoped, tag = 'scoped memory for tpu_custom_call.1']
    #allocation4 [shape = 's32[1]{0}', space=sflag, size = 0x4, scoped, tag = 'scoped memory for tpu_custom_call.1']
    #allocation5 [shape = 'u8[65536]{0}', space=vmem, size = 0x10000, scoped, tag = 'input window, operand 1, single buffered']
    #allocation6 [shape = 's32[1]{0}', space=sflag, size = 0x4, scoped, tag = 'scoped memory for tpu_custom_call.1']
    #allocation7 [shape = 'u8[131072]{0}', space=vmem, size = 0x20000, scoped, tag = 'input window, operand 2, single buffered']
    #allocation8 [shape = 'u8[131072]{0}', space=vmem, size = 0x20000, scoped, tag = 'input window, operand 4, single buffered']
    #allocation9 [shape = 's32[1]{0}', space=sflag, size = 0x4, scoped, tag = 'scoped memory for tpu_custom_call.1']
    #allocation10 [shape = 'u8[65536]{0}', space=vmem, size = 0x10000, scoped, tag = 'input window, operand 6, single buffered']
    #allocation11 [shape = 'u8[65536]{0}', space=vmem, size = 0x10000, scoped, tag = 'input window, operand 8, single buffered']
    #allocation12 [shape = 's32[1]{0}', space=sflag, size = 0x4, scoped, tag = 'scoped memory for tpu_custom_call.1']
    #allocation13 [shape = 'u8[65536]{0}', space=vmem, size = 0x10000, scoped, tag = 'output window, operand 0, single buffered']
    %15 = vsyncpa [#allocation3], 0
    %16 = vsyncpa [#allocation6], 0
    %17 = vsyncpa [#allocation9], 0
    %18 = vsyncpa [#allocation12], 0
    %19 = vsyncpa [#allocation4], 0
    // Predicated region
    $region2: #{tpu_custom_call.1} parent=1 // pred_check
      _
    $region3: #{tpu_custom_call.1} parent=1 // pred_check_branch
      %21 = sbr.rel (0) target = $region5
    $region4: #{tpu_custom_call.1} parent=1 // pred_region
      %s23 = ssub.s32 2048, 2048
      %24 = vsyncadd [#allocation3], %s23
      %s25 = sshll.u32 [#allocation2], 4
      %s26 = int_to_ptr.vmem [resolvable:$true] %s25
      %31 = dma.hbm_to_vmem [thread:$0]  %s0, 2048, %s26, [#allocation3], 128, 128, 8
    $region5: #{tpu_custom_call.1} parent=1 // pred_fallthru
      _
    // Predicated region
    $region6: #{tpu_custom_call.1} parent=1 // pred_check
      _
    $region7: #{tpu_custom_call.1} parent=1 // pred_check_branch
      %33 = sbr.rel (0) target = $region9
    $region8: #{tpu_custom_call.1} parent=1 // pred_region
      %s35 = ssub.s32 2048, 2048
      %36 = vsyncadd [#allocation6], %s35
      %s37 = sshll.u32 [#allocation5], 4
      %s38 = int_to_ptr.vmem [resolvable:$true] %s37
      %43 = dma.hbm_to_vmem [thread:$0]  %s1, 2048, %s38, [#allocation6], 128, 128, 8
    $region9: #{tpu_custom_call.1} parent=1 // pred_fallthru
      _
    // Predicated region
    $region10: #{tpu_custom_call.1} parent=1 // pred_check
      _
    $region11: #{tpu_custom_call.1} parent=1 // pred_check_branch
      %45 = sbr.rel (0) target = $region13
    $region12: #{tpu_custom_call.1} parent=1 // pred_region
      %s47 = ssub.s32 4096, 4096
      %48 = vsyncadd [#allocation6], %s47
      %s49 = sshll.u32 [#allocation7], 4
      %s50 = int_to_ptr.vmem [resolvable:$true] %s49
      %55 = dma.hbm_to_vmem [thread:$0]  %s2, 4096, %s50, [#allocation6], 256, 256, 16
    $region13: #{tpu_custom_call.1} parent=1 // pred_fallthru
      _
    // Predicated region
    $region14: #{tpu_custom_call.1} parent=1 // pred_check
      _
    $region15: #{tpu_custom_call.1} parent=1 // pred_check_branch
      %57 = sbr.rel (0) target = $region17
    $region16: #{tpu_custom_call.1} parent=1 // pred_region
      _
    $region17: #{tpu_custom_call.1} parent=1 // pred_fallthru
      _
    // Predicated region
    $region18: #{tpu_custom_call.1} parent=1 // pred_check
      _
    $region19: #{tpu_custom_call.1} parent=1 // pred_check_branch
      %59 = sbr.rel (0) target = $region21
    $region20: #{tpu_custom_call.1} parent=1 // pred_region
      %s61 = ssub.s32 4096, 4096
      %62 = vsyncadd [#allocation9], %s61
      %s63 = sshll.u32 [#allocation8], 4
      %s64 = int_to_ptr.vmem [resolvable:$true] %s63
      %69 = dma.hbm_to_vmem [thread:$0]  %s4, 4096, %s64, [#allocation9], 128, 128, 8
    $region21: #{tpu_custom_call.1} parent=1 // pred_fallthru
      _
    // Predicated region
    $region22: #{tpu_custom_call.1} parent=1 // pred_check
      _
    $region23: #{tpu_custom_call.1} parent=1 // pred_check_branch
      %71 = sbr.rel (0) target = $region25
    $region24: #{tpu_custom_call.1} parent=1 // pred_region
      _
    $region25: #{tpu_custom_call.1} parent=1 // pred_fallthru
      _
    // Predicated region
    $region26: #{tpu_custom_call.1} parent=1 // pred_check
      _
    $region27: #{tpu_custom_call.1} parent=1 // pred_check_branch
      %73 = sbr.rel (0) target = $region29
    $region28: #{tpu_custom_call.1} parent=1 // pred_region
      %s75 = ssub.s32 2048, 2048
      %76 = vsyncadd [#allocation9], %s75
      %s77 = sshll.u32 [#allocation10], 4
      %s78 = int_to_ptr.vmem [resolvable:$true] %s77
      %83 = dma.hbm_to_vmem [thread:$0]  %s6, 2048, %s78, [#allocation9], 128, 128, 8
    $region29: #{tpu_custom_call.1} parent=1 // pred_fallthru
      _
    // Predicated region
    $region30: #{tpu_custom_call.1} parent=1 // pred_check
      _
    $region31: #{tpu_custom_call.1} parent=1 // pred_check_branch
      %85 = sbr.rel (0) target = $region33
    $region32: #{tpu_custom_call.1} parent=1 // pred_region
      _
    $region33: #{tpu_custom_call.1} parent=1 // pred_fallthru
      _
    // Predicated region
    $region34: #{tpu_custom_call.1} parent=1 // pred_check
      _
    $region35: #{tpu_custom_call.1} parent=1 // pred_check_branch
      %87 = sbr.rel (0) target = $region37
    $region36: #{tpu_custom_call.1} parent=1 // pred_region
      %s89 = ssub.s32 2048, 2048
      %90 = vsyncadd [#allocation12], %s89
      %s91 = sshll.u32 [#allocation11], 4
      %s92 = int_to_ptr.vmem [resolvable:$true] %s91
      %97 = dma.hbm_to_vmem [thread:$0]  %s8, 2048, %s92, [#allocation12], 128, 128, 8
    $region37: #{tpu_custom_call.1} parent=1 // pred_fallthru
      _
    // Predicated region
    $region38: #{tpu_custom_call.1} parent=1 // pred_check
      _
    $region39: #{tpu_custom_call.1} parent=1 // pred_check_branch
      %99 = sbr.rel (0) target = $region41
    $region40: #{tpu_custom_call.1} parent=1 // pred_region
      _
    $region41: #{tpu_custom_call.1} parent=1 // pred_fallthru
      _
    // Predicated region
    $region42: #{tpu_custom_call.1} parent=1 // pred_check
      _
    $region43: #{tpu_custom_call.1} parent=1 // pred_check_branch
      %101 = sbr.rel (0) target = $region45
    $region44: #{tpu_custom_call.1} parent=1 // pred_region
      %102 = dma.done [#allocation3], 2048
    $region45: #{tpu_custom_call.1} parent=1 // pred_fallthru
      _
    // Predicated region
    $region46: #{tpu_custom_call.1} parent=1 // pred_check
      _
    $region47: #{tpu_custom_call.1} parent=1 // pred_check_branch
      %104 = sbr.rel (0) target = $region49
    $region48: #{tpu_custom_call.1} parent=1 // pred_region
      %105 = dma.done [#allocation6], 2048
    $region49: #{tpu_custom_call.1} parent=1 // pred_fallthru
      _
    // Predicated region
    $region50: #{tpu_custom_call.1} parent=1 // pred_check
      _
    $region51: #{tpu_custom_call.1} parent=1 // pred_check_branch
      %107 = sbr.rel (0) target = $region53
    $region52: #{tpu_custom_call.1} parent=1 // pred_region
      %108 = dma.done [#allocation6], 4096
    $region53: #{tpu_custom_call.1} parent=1 // pred_fallthru
      _
    // Predicated region
    $region54: #{tpu_custom_call.1} parent=1 // pred_check
      _
    $region55: #{tpu_custom_call.1} parent=1 // pred_check_branch
      %110 = sbr.rel (0) target = $region57
    $region56: #{tpu_custom_call.1} parent=1 // pred_region
      %111 = dma.done [#allocation9], 4096
    $region57: #{tpu_custom_call.1} parent=1 // pred_fallthru
      _
    // Predicated region
    $region58: #{tpu_custom_call.1} parent=1 // pred_check
      _
    $region59: #{tpu_custom_call.1} parent=1 // pred_check_branch
      %113 = sbr.rel (0) target = $region61
    $region60: #{tpu_custom_call.1} parent=1 // pred_region
      %114 = dma.done [#allocation9], 2048
    $region61: #{tpu_custom_call.1} parent=1 // pred_fallthru
      _
    // Predicated region
    $region62: #{tpu_custom_call.1} parent=1 // pred_check
      _
    $region63: #{tpu_custom_call.1} parent=1 // pred_check_branch
      %116 = sbr.rel (0) target = $region65
    $region64: #{tpu_custom_call.1} parent=1 // pred_region
      %117 = dma.done [#allocation12], 2048
    $region65: #{tpu_custom_call.1} parent=1 // pred_fallthru
      _
    %v118 = vld [vmem:[#allocation2] sm:$0xff]
    %v119 = vld [vmem:[#allocation2 + $0x8] sm:$0xff]
    %v120 = vld [vmem:[#allocation2 + $0x10] sm:$0xff]
    %v121 = vld [vmem:[#allocation2 + $0x18] sm:$0xff]
    %v122 = vld [vmem:[#allocation2 + $0x20] sm:$0xff]
    %v123 = vld [vmem:[#allocation2 + $0x28] sm:$0xff]
    %v124 = vld [vmem:[#allocation2 + $0x30] sm:$0xff]
    %v125 = vld [vmem:[#allocation2 + $0x38] sm:$0xff]
    %v126 = vld [vmem:[#allocation2 + $0x40] sm:$0xff]
    %v127 = vld [vmem:[#allocation2 + $0x48] sm:$0xff]
    %v128 = vld [vmem:[#allocation2 + $0x50] sm:$0xff]
    %v129 = vld [vmem:[#allocation2 + $0x58] sm:$0xff]
    %v130 = vld [vmem:[#allocation2 + $0x60] sm:$0xff]
    %v131 = vld [vmem:[#allocation2 + $0x68] sm:$0xff]
    %v132 = vld [vmem:[#allocation2 + $0x70] sm:$0xff]
    %v133 = vld [vmem:[#allocation2 + $0x78] sm:$0xff]
    %v134 = vld [vmem:[#allocation5] sm:$0xff]
    %v135 = vld [vmem:[#allocation5 + $0x8] sm:$0xff]
    %v136 = vld [vmem:[#allocation5 + $0x10] sm:$0xff]
    %v137 = vld [vmem:[#allocation5 + $0x18] sm:$0xff]
    %v138 = vld [vmem:[#allocation5 + $0x20] sm:$0xff]
    %v139 = vld [vmem:[#allocation5 + $0x28] sm:$0xff]
    %v140 = vld [vmem:[#allocation5 + $0x30] sm:$0xff]
    %v141 = vld [vmem:[#allocation5 + $0x38] sm:$0xff]
    %v142 = vld [vmem:[#allocation5 + $0x40] sm:$0xff]
    %v143 = vld [vmem:[#allocation5 + $0x48] sm:$0xff]
    %v144 = vld [vmem:[#allocation5 + $0x50] sm:$0xff]
    %v145 = vld [vmem:[#allocation5 + $0x58] sm:$0xff]
    %v146 = vld [vmem:[#allocation5 + $0x60] sm:$0xff]
    %v147 = vld [vmem:[#allocation5 + $0x68] sm:$0xff]
    %v148 = vld [vmem:[#allocation5 + $0x70] sm:$0xff]
    %v149 = vld [vmem:[#allocation5 + $0x78] sm:$0xff]
    %v150 = vld [vmem:[#allocation7] sm:$0xff]
    %v151 = vld [vmem:[#allocation7 + $0x8] sm:$0xff]
    %v152 = vld [vmem:[#allocation7 + $0x10] sm:$0xff]
    %v153 = vld [vmem:[#allocation7 + $0x18] sm:$0xff]
    %v154 = vld [vmem:[#allocation7 + $0x20] sm:$0xff]
    %v155 = vld [vmem:[#allocation7 + $0x28] sm:$0xff]
    %v156 = vld [vmem:[#allocation7 + $0x30] sm:$0xff]
    %v157 = vld [vmem:[#allocation7 + $0x38] sm:$0xff]
    %v158 = vld [vmem:[#allocation7 + $0x40] sm:$0xff]
    %v159 = vld [vmem:[#allocation7 + $0x48] sm:$0xff]
    %v160 = vld [vmem:[#allocation7 + $0x50] sm:$0xff]
    %v161 = vld [vmem:[#allocation7 + $0x58] sm:$0xff]
    %v162 = vld [vmem:[#allocation7 + $0x60] sm:$0xff]
    %v163 = vld [vmem:[#allocation7 + $0x68] sm:$0xff]
    %v164 = vld [vmem:[#allocation7 + $0x70] sm:$0xff]
    %v165 = vld [vmem:[#allocation7 + $0x78] sm:$0xff]
    %v166 = vld [vmem:[#allocation7 + $0x80] sm:$0xff]
    %v167 = vld [vmem:[#allocation7 + $0x88] sm:$0xff]
    %v168 = vld [vmem:[#allocation7 + $0x90] sm:$0xff]
    %v169 = vld [vmem:[#allocation7 + $0x98] sm:$0xff]
    %v170 = vld [vmem:[#allocation7 + $0xa0] sm:$0xff]
    %v171 = vld [vmem:[#allocation7 + $0xa8] sm:$0xff]
    %v172 = vld [vmem:[#allocation7 + $0xb0] sm:$0xff]
    %v173 = vld [vmem:[#allocation7 + $0xb8] sm:$0xff]
    %v174 = vld [vmem:[#allocation7 + $0xc0] sm:$0xff]
    %v175 = vld [vmem:[#allocation7 + $0xc8] sm:$0xff]
    %v176 = vld [vmem:[#allocation7 + $0xd0] sm:$0xff]
    %v177 = vld [vmem:[#allocation7 + $0xd8] sm:$0xff]
    %v178 = vld [vmem:[#allocation7 + $0xe0] sm:$0xff]
    %v179 = vld [vmem:[#allocation7 + $0xe8] sm:$0xff]
    %v180 = vld [vmem:[#allocation7 + $0xf0] sm:$0xff]
    %v181 = vld [vmem:[#allocation7 + $0xf8] sm:$0xff]
    %182 = vmatprep.subr.mxu0 0.0
    %183 = vmatpush1.msra.mxu0 %v134
    %184 = vmatprep.subr.mxu0 0.0
    %185 = vmatpush1.msra.mxu0 %v135
    %186 = vmatprep.subr.mxu0 0.0
    %187 = vmatpush1.msra.mxu0 %v136
    %188 = vmatprep.subr.mxu0 0.0
    %189 = vmatpush1.msra.mxu0 %v137
    %190 = vmatprep.subr.mxu0 0.0
    %191 = vmatpush1.msra.mxu0 %v138
    %192 = vmatprep.subr.mxu0 0.0
    %193 = vmatpush1.msra.mxu0 %v139
    %194 = vmatprep.subr.mxu0 0.0
    %195 = vmatpush1.msra.mxu0 %v140
    %196 = vmatprep.subr.mxu0 0.0
    %197 = vmatpush1.msra.mxu0 %v141
    %198 = vmatprep.subr.mxu0 0.0
    %199 = vmatpush1.msra.mxu0 %v142
    %200 = vmatprep.subr.mxu0 0.0
    %201 = vmatpush1.msra.mxu0 %v143
    %202 = vmatprep.subr.mxu0 0.0
    %203 = vmatpush1.msra.mxu0 %v144
    %204 = vmatprep.subr.mxu0 0.0
    %205 = vmatpush1.msra.mxu0 %v145
    %206 = vmatprep.subr.mxu0 0.0
    %207 = vmatpush1.msra.mxu0 %v146
    %208 = vmatprep.subr.mxu0 0.0
    %209 = vmatpush1.msra.mxu0 %v147
    %210 = vmatprep.subr.mxu0 0.0
    %211 = vmatpush1.msra.mxu0 %v148
    %212 = vmatprep.subr.mxu0 0.0
    %213 = vmatpush1.msra.mxu0 %v149
    %214 = vmatprep.subr.mxu0 0.0
    %215 = vmatpush1.msra.mxu0 0.0
    %216 = vmatprep.subr.mxu0 0.0
    %217 = vmatpush1.msra.mxu0 0.0
    %218 = vmatprep.subr.mxu0 0.0
    %219 = vmatpush1.msra.mxu0 0.0
    %220 = vmatprep.subr.mxu0 0.0
    %221 = vmatpush1.msra.mxu0 0.0
    %222 = vmatprep.subr.mxu0 0.0
    %223 = vmatpush1.msra.mxu0 0.0
    %224 = vmatprep.subr.mxu0 0.0
    %225 = vmatpush1.msra.mxu0 0.0
    %226 = vmatprep.subr.mxu0 0.0
    %227 = vmatpush1.msra.mxu0 0.0
    %228 = vmatprep.subr.mxu0 0.0
    %229 = vmatpush1.msra.mxu0 0.0
    %230 = vmatprep.subr.mxu0 0.0
    %231 = vmatpush1.msra.mxu0 0.0
    %232 = vmatprep.subr.mxu0 0.0
    %233 = vmatpush1.msra.mxu0 0.0
    %234 = vmatprep.subr.mxu0 0.0
    %235 = vmatpush1.msra.mxu0 0.0
    %236 = vmatprep.subr.mxu0 0.0
    %237 = vmatpush1.msra.mxu0 0.0
    %238 = vmatprep.subr.mxu0 0.0
    %239 = vmatpush1.msra.mxu0 0.0
    %240 = vmatprep.subr.mxu0 0.0
    %241 = vmatpush1.msra.mxu0 0.0
    %242 = vmatprep.subr.mxu0 0.0
    %243 = vmatpush1.msra.mxu0 0.0
    %244 = vmatprep.subr.mxu0 0.0
    %245 = vmatpush1.msra.mxu0 0.0
    %246 = vmatprep.mubr.f32.mxu0 0.0
    %247 = vmatmul.mubr.f32.gmra.mrb[0].mxu0 %v118
    %v248 = vpop.f32.mrb[0].mxu0
    %v249 = vadd.f32 0.0, %v248
    %v250 = vpop.f32.mrb[0].mxu0
    %251 = vmatprep.mubr.f32.mxu0 0.0
    %252 = vmatmul.mubr.f32.gmra.mrb[0].mxu0 %v119
    %v253 = vpop.f32.mrb[0].mxu0
    %v254 = vadd.f32 0.0, %v253
    %v255 = vpop.f32.mrb[0].mxu0
    %256 = vmatprep.mubr.f32.mxu0 0.0
    %257 = vmatmul.mubr.f32.gmra.mrb[0].mxu0 %v120
    %v258 = vpop.f32.mrb[0].mxu0
    %v259 = vadd.f32 0.0, %v258
    %v260 = vpop.f32.mrb[0].mxu0
    %261 = vmatprep.mubr.f32.mxu0 0.0
    %262 = vmatmul.mubr.f32.gmra.mrb[0].mxu0 %v121
    %v263 = vpop.f32.mrb[0].mxu0
    %v264 = vadd.f32 0.0, %v263
    %v265 = vpop.f32.mrb[0].mxu0
    %266 = vmatprep.mubr.f32.mxu0 0.0
    %267 = vmatmul.mubr.f32.gmra.mrb[0].mxu0 %v122
    %v268 = vpop.f32.mrb[0].mxu0
    %v269 = vadd.f32 0.0, %v268
    %v270 = vpop.f32.mrb[0].mxu0
    %271 = vmatprep.mubr.f32.mxu0 0.0
    %272 = vmatmul.mubr.f32.gmra.mrb[0].mxu0 %v123
    %v273 = vpop.f32.mrb[0].mxu0
    %v274 = vadd.f32 0.0, %v273
    %v275 = vpop.f32.mrb[0].mxu0
    %276 = vmatprep.mubr.f32.mxu0 0.0
    %277 = vmatmul.mubr.f32.gmra.mrb[0].mxu0 %v124
    %v278 = vpop.f32.mrb[0].mxu0
    %v279 = vadd.f32 0.0, %v278
    %v280 = vpop.f32.mrb[0].mxu0
    %281 = vmatprep.mubr.f32.mxu0 0.0
    %282 = vmatmul.mubr.f32.gmra.mrb[0].mxu0 %v125
    %v283 = vpop.f32.mrb[0].mxu0
    %v284 = vadd.f32 0.0, %v283
    %v285 = vpop.f32.mrb[0].mxu0
    %286 = vmatprep.mubr.f32.mxu0 0.0
    %287 = vmatmul.mubr.f32.gmra.mrb[0].mxu0 %v126
    %v288 = vpop.f32.mrb[0].mxu0
    %v289 = vadd.f32 0.0, %v288
    %v290 = vpop.f32.mrb[0].mxu0
    %291 = vmatprep.mubr.f32.mxu0 0.0
    %292 = vmatmul.mubr.f32.gmra.mrb[0].mxu0 %v127
    %v293 = vpop.f32.mrb[0].mxu0
    %v294 = vadd.f32 0.0, %v293
    %v295 = vpop.f32.mrb[0].mxu0
    %296 = vmatprep.mubr.f32.mxu0 0.0
    %297 = vmatmul.mubr.f32.gmra.mrb[0].mxu0 %v128
    %v298 = vpop.f32.mrb[0].mxu0
    %v299 = vadd.f32 0.0, %v298
    %v300 = vpop.f32.mrb[0].mxu0
    %301 = vmatprep.mubr.f32.mxu0 0.0
    %302 = vmatmul.mubr.f32.gmra.mrb[0].mxu0 %v129
    %v303 = vpop.f32.mrb[0].mxu0
    %v304 = vadd.f32 0.0, %v303
    %v305 = vpop.f32.mrb[0].mxu0
    %306 = vmatprep.mubr.f32.mxu0 0.0
    %307 = vmatmul.mubr.f32.gmra.mrb[0].mxu0 %v130
    %v308 = vpop.f32.mrb[0].mxu0
    %v309 = vadd.f32 0.0, %v308
    %v310 = vpop.f32.mrb[0].mxu0
    %311 = vmatprep.mubr.f32.mxu0 0.0
    %312 = vmatmul.mubr.f32.gmra.mrb[0].mxu0 %v131
    %v313 = vpop.f32.mrb[0].mxu0
    %v314 = vadd.f32 0.0, %v313
    %v315 = vpop.f32.mrb[0].mxu0
    %316 = vmatprep.mubr.f32.mxu0 0.0
    %317 = vmatmul.mubr.f32.gmra.mrb[0].mxu0 %v132
    %v318 = vpop.f32.mrb[0].mxu0
    %v319 = vadd.f32 0.0, %v318
    %v320 = vpop.f32.mrb[0].mxu0
    %321 = vmatprep.mubr.f32.mxu0 0.0
    %322 = vmatmul.mubr.f32.gmra.mrb[0].mxu0 %v133
    %v323 = vpop.f32.mrb[0].mxu0
    %v324 = vadd.f32 0.0, %v323
    %v325 = vpop.f32.mrb[0].mxu0
    %326 = vdwg.mxu0
    %v327 = vld [vmem:[%s3] sm:$0x3]
    %v329 = vlaneseq
    %v330 = vshrl.u32 %v329, 7
    %v331 = vsub.s32 0, %v330
    %v332 = vrot.slane %v327, %v331
    %v333 = vlaneseq
    %v334 = vshrl.u32 %v333, 7
    %v335 = vsub.s32 1, %v334
    %v336 = vrot.slane %v327, %v335
    %339 = vmatprep.subr.mxu0 %v151
    %340 = vmatpush1.msra.mxu0 %v150
    %341 = vmatprep.subr.mxu0 %v153
    %342 = vmatpush1.msra.mxu0 %v152
    %343 = vmatprep.subr.mxu0 %v155
    %344 = vmatpush1.msra.mxu0 %v154
    %345 = vmatprep.subr.mxu0 %v157
    %346 = vmatpush1.msra.mxu0 %v156
    %347 = vmatprep.subr.mxu0 %v159
    %348 = vmatpush1.msra.mxu0 %v158
    %349 = vmatprep.subr.mxu0 %v161
    %350 = vmatpush1.msra.mxu0 %v160
    %351 = vmatprep.subr.mxu0 %v163
    %352 = vmatpush1.msra.mxu0 %v162
    %353 = vmatprep.subr.mxu0 %v165
    %354 = vmatpush1.msra.mxu0 %v164
    %355 = vmatprep.subr.mxu0 %v167
    %356 = vmatpush1.msra.mxu0 %v166
    %357 = vmatprep.subr.mxu0 %v169
    %358 = vmatpush1.msra.mxu0 %v168
    %359 = vmatprep.subr.mxu0 %v171
    %360 = vmatpush1.msra.mxu0 %v170
    %361 = vmatprep.subr.mxu0 %v173
    %362 = vmatpush1.msra.mxu0 %v172
    %363 = vmatprep.subr.mxu0 %v175
    %364 = vmatpush1.msra.mxu0 %v174
    %365 = vmatprep.subr.mxu0 %v177
    %366 = vmatpush1.msra.mxu0 %v176
    %367 = vmatprep.subr.mxu0 %v179
    %368 = vmatpush1.msra.mxu0 %v178
    %369 = vmatprep.subr.mxu0 %v181
    %370 = vmatpush1.msra.mxu0 %v180
    %371 = vmatprep.subr.mxu0 0.0
    %372 = vmatpush1.msra.mxu0 0.0
    %373 = vmatprep.subr.mxu0 0.0
    %374 = vmatpush1.msra.mxu0 0.0
    %375 = vmatprep.subr.mxu0 0.0
    %376 = vmatpush1.msra.mxu0 0.0
    %377 = vmatprep.subr.mxu0 0.0
    %378 = vmatpush1.msra.mxu0 0.0
    %379 = vmatprep.subr.mxu0 0.0
    %380 = vmatpush1.msra.mxu0 0.0
    %381 = vmatprep.subr.mxu0 0.0
    %382 = vmatpush1.msra.mxu0 0.0
    %383 = vmatprep.subr.mxu0 0.0
    %384 = vmatpush1.msra.mxu0 0.0
    %385 = vmatprep.subr.mxu0 0.0
    %386 = vmatpush1.msra.mxu0 0.0
    %387 = vmatprep.subr.mxu0 0.0
    %388 = vmatpush1.msra.mxu0 0.0
    %389 = vmatprep.subr.mxu0 0.0
    %390 = vmatpush1.msra.mxu0 0.0
    %391 = vmatprep.subr.mxu0 0.0
    %392 = vmatpush1.msra.mxu0 0.0
    %393 = vmatprep.subr.mxu0 0.0
    %394 = vmatpush1.msra.mxu0 0.0
    %395 = vmatprep.subr.mxu0 0.0
    %396 = vmatpush1.msra.mxu0 0.0
    %397 = vmatprep.subr.mxu0 0.0
    %398 = vmatpush1.msra.mxu0 0.0
    %399 = vmatprep.subr.mxu0 0.0
    %400 = vmatpush1.msra.mxu0 0.0
    %401 = vmatprep.subr.mxu0 0.0
    %402 = vmatpush1.msra.mxu0 0.0
    %403 = vmatprep.mubr.f32.mxu0 0.0
    %404 = vmatmul.mubr.f32.gmra.mrb[0].mxu0 %v249
    %v405 = vpop.f32.mrb[0].mxu0
    %v406 = vadd.f32 %v332, %v405
    %v407 = vpop.f32.mrb[0].mxu0
    %v408 = vadd.f32 %v336, %v407
    %409 = vmatprep.mubr.f32.mxu0 0.0
    %410 = vmatmul.mubr.f32.gmra.mrb[0].mxu0 %v254
    %v411 = vpop.f32.mrb[0].mxu0
    %v412 = vadd.f32 %v332, %v411
    %v413 = vpop.f32.mrb[0].mxu0
    %v414 = vadd.f32 %v336, %v413
    %415 = vmatprep.mubr.f32.mxu0 0.0
    %416 = vmatmul.mubr.f32.gmra.mrb[0].mxu0 %v259
    %v417 = vpop.f32.mrb[0].mxu0
    %v418 = vadd.f32 %v332, %v417
    %v419 = vpop.f32.mrb[0].mxu0
    %v420 = vadd.f32 %v336, %v419
    %421 = vmatprep.mubr.f32.mxu0 0.0
    %422 = vmatmul.mubr.f32.gmra.mrb[0].mxu0 %v264
    %v423 = vpop.f32.mrb[0].mxu0
    %v424 = vadd.f32 %v332, %v423
    %v425 = vpop.f32.mrb[0].mxu0
    %v426 = vadd.f32 %v336, %v425
    %427 = vmatprep.mubr.f32.mxu0 0.0
    %428 = vmatmul.mubr.f32.gmra.mrb[0].mxu0 %v269
    %v429 = vpop.f32.mrb[0].mxu0
    %v430 = vadd.f32 %v332, %v429
    %v431 = vpop.f32.mrb[0].mxu0
    %v432 = vadd.f32 %v336, %v431
    %433 = vmatprep.mubr.f32.mxu0 0.0
    %434 = vmatmul.mubr.f32.gmra.mrb[0].mxu0 %v274
    %v435 = vpop.f32.mrb[0].mxu0
    %v436 = vadd.f32 %v332, %v435
    %v437 = vpop.f32.mrb[0].mxu0
    %v438 = vadd.f32 %v336, %v437
    %439 = vmatprep.mubr.f32.mxu0 0.0
    %440 = vmatmul.mubr.f32.gmra.mrb[0].mxu0 %v279
    %v441 = vpop.f32.mrb[0].mxu0
    %v442 = vadd.f32 %v332, %v441
    %v443 = vpop.f32.mrb[0].mxu0
    %v444 = vadd.f32 %v336, %v443
    %445 = vmatprep.mubr.f32.mxu0 0.0
    %446 = vmatmul.mubr.f32.gmra.mrb[0].mxu0 %v284
    %v447 = vpop.f32.mrb[0].mxu0
    %v448 = vadd.f32 %v332, %v447
    %v449 = vpop.f32.mrb[0].mxu0
    %v450 = vadd.f32 %v336, %v449
    %451 = vmatprep.mubr.f32.mxu0 0.0
    %452 = vmatmul.mubr.f32.gmra.mrb[0].mxu0 %v289
    %v453 = vpop.f32.mrb[0].mxu0
    %v454 = vadd.f32 %v332, %v453
    %v455 = vpop.f32.mrb[0].mxu0
    %v456 = vadd.f32 %v336, %v455
    %457 = vmatprep.mubr.f32.mxu0 0.0
    %458 = vmatmul.mubr.f32.gmra.mrb[0].mxu0 %v294
    %v459 = vpop.f32.mrb[0].mxu0
    %v460 = vadd.f32 %v332, %v459
    %v461 = vpop.f32.mrb[0].mxu0
    %v462 = vadd.f32 %v336, %v461
    %463 = vmatprep.mubr.f32.mxu0 0.0
    %464 = vmatmul.mubr.f32.gmra.mrb[0].mxu0 %v299
    %v465 = vpop.f32.mrb[0].mxu0
    %v466 = vadd.f32 %v332, %v465
    %v467 = vpop.f32.mrb[0].mxu0
    %v468 = vadd.f32 %v336, %v467
    %469 = vmatprep.mubr.f32.mxu0 0.0
    %470 = vmatmul.mubr.f32.gmra.mrb[0].mxu0 %v304
    %v471 = vpop.f32.mrb[0].mxu0
    %v472 = vadd.f32 %v332, %v471
    %v473 = vpop.f32.mrb[0].mxu0
    %v474 = vadd.f32 %v336, %v473
    %475 = vmatprep.mubr.f32.mxu0 0.0
    %476 = vmatmul.mubr.f32.gmra.mrb[0].mxu0 %v309
    %v477 = vpop.f32.mrb[0].mxu0
    %v478 = vadd.f32 %v332, %v477
    %v479 = vpop.f32.mrb[0].mxu0
    %v480 = vadd.f32 %v336, %v479
    %481 = vmatprep.mubr.f32.mxu0 0.0
    %482 = vmatmul.mubr.f32.gmra.mrb[0].mxu0 %v314
    %v483 = vpop.f32.mrb[0].mxu0
    %v484 = vadd.f32 %v332, %v483
    %v485 = vpop.f32.mrb[0].mxu0
    %v486 = vadd.f32 %v336, %v485
    %487 = vmatprep.mubr.f32.mxu0 0.0
    %488 = vmatmul.mubr.f32.gmra.mrb[0].mxu0 %v319
    %v489 = vpop.f32.mrb[0].mxu0
    %v490 = vadd.f32 %v332, %v489
    %v491 = vpop.f32.mrb[0].mxu0
    %v492 = vadd.f32 %v336, %v491
    %493 = vmatprep.mubr.f32.mxu0 0.0
    %494 = vmatmul.mubr.f32.gmra.mrb[0].mxu0 %v324
    %v495 = vpop.f32.mrb[0].mxu0
    %v496 = vadd.f32 %v332, %v495
    %v497 = vpop.f32.mrb[0].mxu0
    %v498 = vadd.f32 %v336, %v497
    %499 = vdwg.mxu0
    %v500 = vmax.f32 %v406, 0.0
    %v501 = vmax.f32 %v408, 0.0
    %v502 = vmax.f32 %v412, 0.0
    %v503 = vmax.f32 %v414, 0.0
    %v504 = vmax.f32 %v418, 0.0
    %v505 = vmax.f32 %v420, 0.0
    %v506 = vmax.f32 %v424, 0.0
    %v507 = vmax.f32 %v426, 0.0
    %v508 = vmax.f32 %v430, 0.0
    %v509 = vmax.f32 %v432, 0.0
    %v510 = vmax.f32 %v436, 0.0
    %v511 = vmax.f32 %v438, 0.0
    %v512 = vmax.f32 %v442, 0.0
    %v513 = vmax.f32 %v444, 0.0
    %v514 = vmax.f32 %v448, 0.0
    %v515 = vmax.f32 %v450, 0.0
    %v516 = vmax.f32 %v454, 0.0
    %v517 = vmax.f32 %v456, 0.0
    %v518 = vmax.f32 %v460, 0.0
    %v519 = vmax.f32 %v462, 0.0
    %v520 = vmax.f32 %v466, 0.0
    %v521 = vmax.f32 %v468, 0.0
    %v522 = vmax.f32 %v472, 0.0
    %v523 = vmax.f32 %v474, 0.0
    %v524 = vmax.f32 %v478, 0.0
    %v525 = vmax.f32 %v480, 0.0
    %v526 = vmax.f32 %v484, 0.0
    %v527 = vmax.f32 %v486, 0.0
    %v528 = vmax.f32 %v490, 0.0
    %v529 = vmax.f32 %v492, 0.0
    %v530 = vmax.f32 %v496, 0.0
    %v531 = vmax.f32 %v498, 0.0
    %v532 = vld [vmem:[#allocation8] sm:$0xff]
    %v533 = vld [vmem:[#allocation8 + $0x8] sm:$0xff]
    %v534 = vld [vmem:[#allocation8 + $0x10] sm:$0xff]
    %v535 = vld [vmem:[#allocation8 + $0x18] sm:$0xff]
    %v536 = vld [vmem:[#allocation8 + $0x20] sm:$0xff]
    %v537 = vld [vmem:[#allocation8 + $0x28] sm:$0xff]
    %v538 = vld [vmem:[#allocation8 + $0x30] sm:$0xff]
    %v539 = vld [vmem:[#allocation8 + $0x38] sm:$0xff]
    %v540 = vld [vmem:[#allocation8 + $0x40] sm:$0xff]
    %v541 = vld [vmem:[#allocation8 + $0x48] sm:$0xff]
    %v542 = vld [vmem:[#allocation8 + $0x50] sm:$0xff]
    %v543 = vld [vmem:[#allocation8 + $0x58] sm:$0xff]
    %v544 = vld [vmem:[#allocation8 + $0x60] sm:$0xff]
    %v545 = vld [vmem:[#allocation8 + $0x68] sm:$0xff]
    %v546 = vld [vmem:[#allocation8 + $0x70] sm:$0xff]
    %v547 = vld [vmem:[#allocation8 + $0x78] sm:$0xff]
    %v548 = vld [vmem:[#allocation8 + $0x80] sm:$0xff]
    %v549 = vld [vmem:[#allocation8 + $0x88] sm:$0xff]
    %v550 = vld [vmem:[#allocation8 + $0x90] sm:$0xff]
    %v551 = vld [vmem:[#allocation8 + $0x98] sm:$0xff]
    %v552 = vld [vmem:[#allocation8 + $0xa0] sm:$0xff]
    %v553 = vld [vmem:[#allocation8 + $0xa8] sm:$0xff]
    %v554 = vld [vmem:[#allocation8 + $0xb0] sm:$0xff]
    %v555 = vld [vmem:[#allocation8 + $0xb8] sm:$0xff]
    %v556 = vld [vmem:[#allocation8 + $0xc0] sm:$0xff]
    %v557 = vld [vmem:[#allocation8 + $0xc8] sm:$0xff]
    %v558 = vld [vmem:[#allocation8 + $0xd0] sm:$0xff]
    %v559 = vld [vmem:[#allocation8 + $0xd8] sm:$0xff]
    %v560 = vld [vmem:[#allocation8 + $0xe0] sm:$0xff]
    %v561 = vld [vmem:[#allocation8 + $0xe8] sm:$0xff]
    %v562 = vld [vmem:[#allocation8 + $0xf0] sm:$0xff]
    %v563 = vld [vmem:[#allocation8 + $0xf8] sm:$0xff]
    %564 = vmatprep.subr.mxu0 0.0
    %565 = vmatpush1.msra.mxu0 %v532
    %566 = vmatprep.subr.mxu0 0.0
    %567 = vmatpush1.msra.mxu0 %v533
    %568 = vmatprep.subr.mxu0 0.0
    %569 = vmatpush1.msra.mxu0 %v534
    %570 = vmatprep.subr.mxu0 0.0
    %571 = vmatpush1.msra.mxu0 %v535
    %572 = vmatprep.subr.mxu0 0.0
    %573 = vmatpush1.msra.mxu0 %v536
    %574 = vmatprep.subr.mxu0 0.0
    %575 = vmatpush1.msra.mxu0 %v537
    %576 = vmatprep.subr.mxu0 0.0
    %577 = vmatpush1.msra.mxu0 %v538
    %578 = vmatprep.subr.mxu0 0.0
    %579 = vmatpush1.msra.mxu0 %v539
    %580 = vmatprep.subr.mxu0 0.0
    %581 = vmatpush1.msra.mxu0 %v540
    %582 = vmatprep.subr.mxu0 0.0
    %583 = vmatpush1.msra.mxu0 %v541
    %584 = vmatprep.subr.mxu0 0.0
    %585 = vmatpush1.msra.mxu0 %v542
    %586 = vmatprep.subr.mxu0 0.0
    %587 = vmatpush1.msra.mxu0 %v543
    %588 = vmatprep.subr.mxu0 0.0
    %589 = vmatpush1.msra.mxu0 %v544
    %590 = vmatprep.subr.mxu0 0.0
    %591 = vmatpush1.msra.mxu0 %v545
    %592 = vmatprep.subr.mxu0 0.0
    %593 = vmatpush1.msra.mxu0 %v546
    %594 = vmatprep.subr.mxu0 0.0
    %595 = vmatpush1.msra.mxu0 %v547
    %596 = vmatprep.subr.mxu0 0.0
    %597 = vmatpush1.msra.mxu0 %v548
    %598 = vmatprep.subr.mxu0 0.0
    %599 = vmatpush1.msra.mxu0 %v549
    %600 = vmatprep.subr.mxu0 0.0
    %601 = vmatpush1.msra.mxu0 %v550
    %602 = vmatprep.subr.mxu0 0.0
    %603 = vmatpush1.msra.mxu0 %v551
    %604 = vmatprep.subr.mxu0 0.0
    %605 = vmatpush1.msra.mxu0 %v552
    %606 = vmatprep.subr.mxu0 0.0
    %607 = vmatpush1.msra.mxu0 %v553
    %608 = vmatprep.subr.mxu0 0.0
    %609 = vmatpush1.msra.mxu0 %v554
    %610 = vmatprep.subr.mxu0 0.0
    %611 = vmatpush1.msra.mxu0 %v555
    %612 = vmatprep.subr.mxu0 0.0
    %613 = vmatpush1.msra.mxu0 %v556
    %614 = vmatprep.subr.mxu0 0.0
    %615 = vmatpush1.msra.mxu0 %v557
    %616 = vmatprep.subr.mxu0 0.0
    %617 = vmatpush1.msra.mxu0 %v558
    %618 = vmatprep.subr.mxu0 0.0
    %619 = vmatpush1.msra.mxu0 %v559
    %620 = vmatprep.subr.mxu0 0.0
    %621 = vmatpush1.msra.mxu0 %v560
    %622 = vmatprep.subr.mxu0 0.0
    %623 = vmatpush1.msra.mxu0 %v561
    %624 = vmatprep.subr.mxu0 0.0
    %625 = vmatpush1.msra.mxu0 %v562
    %626 = vmatprep.subr.mxu0 0.0
    %627 = vmatpush1.msra.mxu0 %v563
    %628 = vmatprep.mubr.f32.mxu0 %v501
    %629 = vmatmul.mubr.f32.gmra.mrb[0].mxu0 %v500
    %v630 = vpop.f32.mrb[0].mxu0
    %v631 = vadd.f32 0.0, %v630
    %v632 = vpop.f32.mrb[0].mxu0
    %633 = vmatprep.mubr.f32.mxu0 %v503
    %634 = vmatmul.mubr.f32.gmra.mrb[0].mxu0 %v502
    %v635 = vpop.f32.mrb[0].mxu0
    %v636 = vadd.f32 0.0, %v635
    %v637 = vpop.f32.mrb[0].mxu0
    %638 = vmatprep.mubr.f32.mxu0 %v505
    %639 = vmatmul.mubr.f32.gmra.mrb[0].mxu0 %v504
    %v640 = vpop.f32.mrb[0].mxu0
    %v641 = vadd.f32 0.0, %v640
    %v642 = vpop.f32.mrb[0].mxu0
    %643 = vmatprep.mubr.f32.mxu0 %v507
    %644 = vmatmul.mubr.f32.gmra.mrb[0].mxu0 %v506
    %v645 = vpop.f32.mrb[0].mxu0
    %v646 = vadd.f32 0.0, %v645
    %v647 = vpop.f32.mrb[0].mxu0
    %648 = vmatprep.mubr.f32.mxu0 %v509
    %649 = vmatmul.mubr.f32.gmra.mrb[0].mxu0 %v508
    %v650 = vpop.f32.mrb[0].mxu0
    %v651 = vadd.f32 0.0, %v650
    %v652 = vpop.f32.mrb[0].mxu0
    %653 = vmatprep.mubr.f32.mxu0 %v511
    %654 = vmatmul.mubr.f32.gmra.mrb[0].mxu0 %v510
    %v655 = vpop.f32.mrb[0].mxu0
    %v656 = vadd.f32 0.0, %v655
    %v657 = vpop.f32.mrb[0].mxu0
    %658 = vmatprep.mubr.f32.mxu0 %v513
    %659 = vmatmul.mubr.f32.gmra.mrb[0].mxu0 %v512
    %v660 = vpop.f32.mrb[0].mxu0
    %v661 = vadd.f32 0.0, %v660
    %v662 = vpop.f32.mrb[0].mxu0
    %663 = vmatprep.mubr.f32.mxu0 %v515
    %664 = vmatmul.mubr.f32.gmra.mrb[0].mxu0 %v514
    %v665 = vpop.f32.mrb[0].mxu0
    %v666 = vadd.f32 0.0, %v665
    %v667 = vpop.f32.mrb[0].mxu0
    %668 = vmatprep.mubr.f32.mxu0 %v517
    %669 = vmatmul.mubr.f32.gmra.mrb[0].mxu0 %v516
    %v670 = vpop.f32.mrb[0].mxu0
    %v671 = vadd.f32 0.0, %v670
    %v672 = vpop.f32.mrb[0].mxu0
    %673 = vmatprep.mubr.f32.mxu0 %v519
    %674 = vmatmul.mubr.f32.gmra.mrb[0].mxu0 %v518
    %v675 = vpop.f32.mrb[0].mxu0
    %v676 = vadd.f32 0.0, %v675
    %v677 = vpop.f32.mrb[0].mxu0
    %678 = vmatprep.mubr.f32.mxu0 %v521
    %679 = vmatmul.mubr.f32.gmra.mrb[0].mxu0 %v520
    %v680 = vpop.f32.mrb[0].mxu0
    %v681 = vadd.f32 0.0, %v680
    %v682 = vpop.f32.mrb[0].mxu0
    %683 = vmatprep.mubr.f32.mxu0 %v523
    %684 = vmatmul.mubr.f32.gmra.mrb[0].mxu0 %v522
    %v685 = vpop.f32.mrb[0].mxu0
    %v686 = vadd.f32 0.0, %v685
    %v687 = vpop.f32.mrb[0].mxu0
    %688 = vmatprep.mubr.f32.mxu0 %v525
    %689 = vmatmul.mubr.f32.gmra.mrb[0].mxu0 %v524
    %v690 = vpop.f32.mrb[0].mxu0
    %v691 = vadd.f32 0.0, %v690
    %v692 = vpop.f32.mrb[0].mxu0
    %693 = vmatprep.mubr.f32.mxu0 %v527
    %694 = vmatmul.mubr.f32.gmra.mrb[0].mxu0 %v526
    %v695 = vpop.f32.mrb[0].mxu0
    %v696 = vadd.f32 0.0, %v695
    %v697 = vpop.f32.mrb[0].mxu0
    %698 = vmatprep.mubr.f32.mxu0 %v529
    %699 = vmatmul.mubr.f32.gmra.mrb[0].mxu0 %v528
    %v700 = vpop.f32.mrb[0].mxu0
    %v701 = vadd.f32 0.0, %v700
    %v702 = vpop.f32.mrb[0].mxu0
    %703 = vmatprep.mubr.f32.mxu0 %v531
    %704 = vmatmul.mubr.f32.gmra.mrb[0].mxu0 %v530
    %v705 = vpop.f32.mrb[0].mxu0
    %v706 = vadd.f32 0.0, %v705
    %v707 = vpop.f32.mrb[0].mxu0
    %708 = vdwg.mxu0
    %v709 = vld [vmem:[%s5] sm:$0x1]
    %v711 = vlaneseq
    %v712 = vshrl.u32 %v711, 7
    %v713 = vsub.s32 0, %v712
    %v714 = vrot.slane %v709, %v713
    %716 = vmatprep.subr.mxu0 0.0
    %717 = vmatpush1.msra.mxu0 %v631
    %718 = vmatprep.subr.mxu0 0.0
    %719 = vmatpush1.msra.mxu0 %v636
    %720 = vmatprep.subr.mxu0 0.0
    %721 = vmatpush1.msra.mxu0 %v641
    %722 = vmatprep.subr.mxu0 0.0
    %723 = vmatpush1.msra.mxu0 %v646
    %724 = vmatprep.subr.mxu0 0.0
    %725 = vmatpush1.msra.mxu0 %v651
    %726 = vmatprep.subr.mxu0 0.0
    %727 = vmatpush1.msra.mxu0 %v656
    %728 = vmatprep.subr.mxu0 0.0
    %729 = vmatpush1.msra.mxu0 %v661
    %730 = vmatprep.subr.mxu0 0.0
    %731 = vmatpush1.msra.mxu0 %v666
    %732 = vmatprep.subr.mxu0 0.0
    %733 = vmatpush1.msra.mxu0 %v671
    %734 = vmatprep.subr.mxu0 0.0
    %735 = vmatpush1.msra.mxu0 %v676
    %736 = vmatprep.subr.mxu0 0.0
    %737 = vmatpush1.msra.mxu0 %v681
    %738 = vmatprep.subr.mxu0 0.0
    %739 = vmatpush1.msra.mxu0 %v686
    %740 = vmatprep.subr.mxu0 0.0
    %741 = vmatpush1.msra.mxu0 %v691
    %742 = vmatprep.subr.mxu0 0.0
    %743 = vmatpush1.msra.mxu0 %v696
    %744 = vmatprep.subr.mxu0 0.0
    %745 = vmatpush1.msra.mxu0 %v701
    %746 = vmatprep.subr.mxu0 0.0
    %747 = vmatpush1.msra.mxu0 %v706
    %748 = vmatprep.subr.mxu0 0.0
    %749 = vmatpush1.msra.mxu0 0.0
    %750 = vmatprep.subr.mxu0 0.0
    %751 = vmatpush1.msra.mxu0 0.0
    %752 = vmatprep.subr.mxu0 0.0
    %753 = vmatpush1.msra.mxu0 0.0
    %754 = vmatprep.subr.mxu0 0.0
    %755 = vmatpush1.msra.mxu0 0.0
    %756 = vmatprep.subr.mxu0 0.0
    %757 = vmatpush1.msra.mxu0 0.0
    %758 = vmatprep.subr.mxu0 0.0
    %759 = vmatpush1.msra.mxu0 0.0
    %760 = vmatprep.subr.mxu0 0.0
    %761 = vmatpush1.msra.mxu0 0.0
    %762 = vmatprep.subr.mxu0 0.0
    %763 = vmatpush1.msra.mxu0 0.0
    %764 = vmatprep.subr.mxu0 0.0
    %765 = vmatpush1.msra.mxu0 0.0
    %766 = vmatprep.subr.mxu0 0.0
    %767 = vmatpush1.msra.mxu0 0.0
    %768 = vmatprep.subr.mxu0 0.0
    %769 = vmatpush1.msra.mxu0 0.0
    %770 = vmatprep.subr.mxu0 0.0
    %771 = vmatpush1.msra.mxu0 0.0
    %772 = vmatprep.subr.mxu0 0.0
    %773 = vmatpush1.msra.mxu0 0.0
    %774 = vmatprep.subr.mxu0 0.0
    %775 = vmatpush1.msra.mxu0 0.0
    %776 = vmatprep.subr.mxu0 0.0
    %777 = vmatpush1.msra.mxu0 0.0
    %778 = vmatprep.subr.mxu0 0.0
    %779 = vmatpush1.msra.mxu0 0.0
    %780 = vmatprep.mubr.f32.mxu0 0.0
    %781 = vmatmul.mubr.f32.gmra.mrb[0].mxu0 %v118
    %v782 = vpop.f32.mrb[0].mxu0
    %v783 = vadd.f32 %v714, %v782
    %v784 = vpop.f32.mrb[0].mxu0
    %785 = vmatprep.mubr.f32.mxu0 0.0
    %786 = vmatmul.mubr.f32.gmra.mrb[0].mxu0 %v119
    %v787 = vpop.f32.mrb[0].mxu0
    %v788 = vadd.f32 %v714, %v787
    %v789 = vpop.f32.mrb[0].mxu0
    %790 = vmatprep.mubr.f32.mxu0 0.0
    %791 = vmatmul.mubr.f32.gmra.mrb[0].mxu0 %v120
    %v792 = vpop.f32.mrb[0].mxu0
    %v793 = vadd.f32 %v714, %v792
    %v794 = vpop.f32.mrb[0].mxu0
    %795 = vmatprep.mubr.f32.mxu0 0.0
    %796 = vmatmul.mubr.f32.gmra.mrb[0].mxu0 %v121
    %v797 = vpop.f32.mrb[0].mxu0
    %v798 = vadd.f32 %v714, %v797
    %v799 = vpop.f32.mrb[0].mxu0
    %800 = vmatprep.mubr.f32.mxu0 0.0
    %801 = vmatmul.mubr.f32.gmra.mrb[0].mxu0 %v122
    %v802 = vpop.f32.mrb[0].mxu0
    %v803 = vadd.f32 %v714, %v802
    %v804 = vpop.f32.mrb[0].mxu0
    %805 = vmatprep.mubr.f32.mxu0 0.0
    %806 = vmatmul.mubr.f32.gmra.mrb[0].mxu0 %v123
    %v807 = vpop.f32.mrb[0].mxu0
    %v808 = vadd.f32 %v714, %v807
    %v809 = vpop.f32.mrb[0].mxu0
    %810 = vmatprep.mubr.f32.mxu0 0.0
    %811 = vmatmul.mubr.f32.gmra.mrb[0].mxu0 %v124
    %v812 = vpop.f32.mrb[0].mxu0
    %v813 = vadd.f32 %v714, %v812
    %v814 = vpop.f32.mrb[0].mxu0
    %815 = vmatprep.mubr.f32.mxu0 0.0
    %816 = vmatmul.mubr.f32.gmra.mrb[0].mxu0 %v125
    %v817 = vpop.f32.mrb[0].mxu0
    %v818 = vadd.f32 %v714, %v817
    %v819 = vpop.f32.mrb[0].mxu0
    %820 = vmatprep.mubr.f32.mxu0 0.0
    %821 = vmatmul.mubr.f32.gmra.mrb[0].mxu0 %v126
    %v822 = vpop.f32.mrb[0].mxu0
    %v823 = vadd.f32 %v714, %v822
    %v824 = vpop.f32.mrb[0].mxu0
    %825 = vmatprep.mubr.f32.mxu0 0.0
    %826 = vmatmul.mubr.f32.gmra.mrb[0].mxu0 %v127
    %v827 = vpop.f32.mrb[0].mxu0
    %v828 = vadd.f32 %v714, %v827
    %v829 = vpop.f32.mrb[0].mxu0
    %830 = vmatprep.mubr.f32.mxu0 0.0
    %831 = vmatmul.mubr.f32.gmra.mrb[0].mxu0 %v128
    %v832 = vpop.f32.mrb[0].mxu0
    %v833 = vadd.f32 %v714, %v832
    %v834 = vpop.f32.mrb[0].mxu0
    %835 = vmatprep.mubr.f32.mxu0 0.0
    %836 = vmatmul.mubr.f32.gmra.mrb[0].mxu0 %v129
    %v837 = vpop.f32.mrb[0].mxu0
    %v838 = vadd.f32 %v714, %v837
    %v839 = vpop.f32.mrb[0].mxu0
    %840 = vmatprep.mubr.f32.mxu0 0.0
    %841 = vmatmul.mubr.f32.gmra.mrb[0].mxu0 %v130
    %v842 = vpop.f32.mrb[0].mxu0
    %v843 = vadd.f32 %v714, %v842
    %v844 = vpop.f32.mrb[0].mxu0
    %845 = vmatprep.mubr.f32.mxu0 0.0
    %846 = vmatmul.mubr.f32.gmra.mrb[0].mxu0 %v131
    %v847 = vpop.f32.mrb[0].mxu0
    %v848 = vadd.f32 %v714, %v847
    %v849 = vpop.f32.mrb[0].mxu0
    %850 = vmatprep.mubr.f32.mxu0 0.0
    %851 = vmatmul.mubr.f32.gmra.mrb[0].mxu0 %v132
    %v852 = vpop.f32.mrb[0].mxu0
    %v853 = vadd.f32 %v714, %v852
    %v854 = vpop.f32.mrb[0].mxu0
    %855 = vmatprep.mubr.f32.mxu0 0.0
    %856 = vmatmul.mubr.f32.gmra.mrb[0].mxu0 %v133
    %v857 = vpop.f32.mrb[0].mxu0
    %v858 = vadd.f32 %v714, %v857
    %v859 = vpop.f32.mrb[0].mxu0
    %860 = vdwg.mxu0
    %v861 = vmax.f32 %v783, 0.0
    %v862 = vmax.f32 %v788, 0.0
    %v863 = vmax.f32 %v793, 0.0
    %v864 = vmax.f32 %v798, 0.0
    %v865 = vmax.f32 %v803, 0.0
    %v866 = vmax.f32 %v808, 0.0
    %v867 = vmax.f32 %v813, 0.0
    %v868 = vmax.f32 %v818, 0.0
    %v869 = vmax.f32 %v823, 0.0
    %v870 = vmax.f32 %v828, 0.0
    %v871 = vmax.f32 %v833, 0.0
    %v872 = vmax.f32 %v838, 0.0
    %v873 = vmax.f32 %v843, 0.0
    %v874 = vmax.f32 %v848, 0.0
    %v875 = vmax.f32 %v853, 0.0
    %v876 = vmax.f32 %v858, 0.0
    %v877 = vld [vmem:[#allocation10] sm:$0xff]
    %v878 = vld [vmem:[#allocation10 + $0x8] sm:$0xff]
    %v879 = vld [vmem:[#allocation10 + $0x10] sm:$0xff]
    %v880 = vld [vmem:[#allocation10 + $0x18] sm:$0xff]
    %v881 = vld [vmem:[#allocation10 + $0x20] sm:$0xff]
    %v882 = vld [vmem:[#allocation10 + $0x28] sm:$0xff]
    %v883 = vld [vmem:[#allocation10 + $0x30] sm:$0xff]
    %v884 = vld [vmem:[#allocation10 + $0x38] sm:$0xff]
    %v885 = vld [vmem:[#allocation10 + $0x40] sm:$0xff]
    %v886 = vld [vmem:[#allocation10 + $0x48] sm:$0xff]
    %v887 = vld [vmem:[#allocation10 + $0x50] sm:$0xff]
    %v888 = vld [vmem:[#allocation10 + $0x58] sm:$0xff]
    %v889 = vld [vmem:[#allocation10 + $0x60] sm:$0xff]
    %v890 = vld [vmem:[#allocation10 + $0x68] sm:$0xff]
    %v891 = vld [vmem:[#allocation10 + $0x70] sm:$0xff]
    %v892 = vld [vmem:[#allocation10 + $0x78] sm:$0xff]
    %893 = vmatprep.subr.mxu0 0.0
    %894 = vmatpush1.msra.mxu0 %v877
    %895 = vmatprep.subr.mxu0 0.0
    %896 = vmatpush1.msra.mxu0 %v878
    %897 = vmatprep.subr.mxu0 0.0
    %898 = vmatpush1.msra.mxu0 %v879
    %899 = vmatprep.subr.mxu0 0.0
    %900 = vmatpush1.msra.mxu0 %v880
    %901 = vmatprep.subr.mxu0 0.0
    %902 = vmatpush1.msra.mxu0 %v881
    %903 = vmatprep.subr.mxu0 0.0
    %904 = vmatpush1.msra.mxu0 %v882
    %905 = vmatprep.subr.mxu0 0.0
    %906 = vmatpush1.msra.mxu0 %v883
    %907 = vmatprep.subr.mxu0 0.0
    %908 = vmatpush1.msra.mxu0 %v884
    %909 = vmatprep.subr.mxu0 0.0
    %910 = vmatpush1.msra.mxu0 %v885
    %911 = vmatprep.subr.mxu0 0.0
    %912 = vmatpush1.msra.mxu0 %v886
    %913 = vmatprep.subr.mxu0 0.0
    %914 = vmatpush1.msra.mxu0 %v887
    %915 = vmatprep.subr.mxu0 0.0
    %916 = vmatpush1.msra.mxu0 %v888
    %917 = vmatprep.subr.mxu0 0.0
    %918 = vmatpush1.msra.mxu0 %v889
    %919 = vmatprep.subr.mxu0 0.0
    %920 = vmatpush1.msra.mxu0 %v890
    %921 = vmatprep.subr.mxu0 0.0
    %922 = vmatpush1.msra.mxu0 %v891
    %923 = vmatprep.subr.mxu0 0.0
    %924 = vmatpush1.msra.mxu0 %v892
    %925 = vmatprep.subr.mxu0 0.0
    %926 = vmatpush1.msra.mxu0 0.0
    %927 = vmatprep.subr.mxu0 0.0
    %928 = vmatpush1.msra.mxu0 0.0
    %929 = vmatprep.subr.mxu0 0.0
    %930 = vmatpush1.msra.mxu0 0.0
    %931 = vmatprep.subr.mxu0 0.0
    %932 = vmatpush1.msra.mxu0 0.0
    %933 = vmatprep.subr.mxu0 0.0
    %934 = vmatpush1.msra.mxu0 0.0
    %935 = vmatprep.subr.mxu0 0.0
    %936 = vmatpush1.msra.mxu0 0.0
    %937 = vmatprep.subr.mxu0 0.0
    %938 = vmatpush1.msra.mxu0 0.0
    %939 = vmatprep.subr.mxu0 0.0
    %940 = vmatpush1.msra.mxu0 0.0
    %941 = vmatprep.subr.mxu0 0.0
    %942 = vmatpush1.msra.mxu0 0.0
    %943 = vmatprep.subr.mxu0 0.0
    %944 = vmatpush1.msra.mxu0 0.0
    %945 = vmatprep.subr.mxu0 0.0
    %946 = vmatpush1.msra.mxu0 0.0
    %947 = vmatprep.subr.mxu0 0.0
    %948 = vmatpush1.msra.mxu0 0.0
    %949 = vmatprep.subr.mxu0 0.0
    %950 = vmatpush1.msra.mxu0 0.0
    %951 = vmatprep.subr.mxu0 0.0
    %952 = vmatpush1.msra.mxu0 0.0
    %953 = vmatprep.subr.mxu0 0.0
    %954 = vmatpush1.msra.mxu0 0.0
    %955 = vmatprep.subr.mxu0 0.0
    %956 = vmatpush1.msra.mxu0 0.0
    %957 = vmatprep.mubr.f32.mxu0 0.0
    %958 = vmatmul.mubr.f32.gmra.mrb[0].mxu0 %v861
    %v959 = vpop.f32.mrb[0].mxu0
    %v960 = vadd.f32 0.0, %v959
    %v961 = vpop.f32.mrb[0].mxu0
    %962 = vmatprep.mubr.f32.mxu0 0.0
    %963 = vmatmul.mubr.f32.gmra.mrb[0].mxu0 %v862
    %v964 = vpop.f32.mrb[0].mxu0
    %v965 = vadd.f32 0.0, %v964
    %v966 = vpop.f32.mrb[0].mxu0
    %967 = vmatprep.mubr.f32.mxu0 0.0
    %968 = vmatmul.mubr.f32.gmra.mrb[0].mxu0 %v863
    %v969 = vpop.f32.mrb[0].mxu0
    %v970 = vadd.f32 0.0, %v969
    %v971 = vpop.f32.mrb[0].mxu0
    %972 = vmatprep.mubr.f32.mxu0 0.0
    %973 = vmatmul.mubr.f32.gmra.mrb[0].mxu0 %v864
    %v974 = vpop.f32.mrb[0].mxu0
    %v975 = vadd.f32 0.0, %v974
    %v976 = vpop.f32.mrb[0].mxu0
    %977 = vmatprep.mubr.f32.mxu0 0.0
    %978 = vmatmul.mubr.f32.gmra.mrb[0].mxu0 %v865
    %v979 = vpop.f32.mrb[0].mxu0
    %v980 = vadd.f32 0.0, %v979
    %v981 = vpop.f32.mrb[0].mxu0
    %982 = vmatprep.mubr.f32.mxu0 0.0
    %983 = vmatmul.mubr.f32.gmra.mrb[0].mxu0 %v866
    %v984 = vpop.f32.mrb[0].mxu0
    %v985 = vadd.f32 0.0, %v984
    %v986 = vpop.f32.mrb[0].mxu0
    %987 = vmatprep.mubr.f32.mxu0 0.0
    %988 = vmatmul.mubr.f32.gmra.mrb[0].mxu0 %v867
    %v989 = vpop.f32.mrb[0].mxu0
    %v990 = vadd.f32 0.0, %v989
    %v991 = vpop.f32.mrb[0].mxu0
    %992 = vmatprep.mubr.f32.mxu0 0.0
    %993 = vmatmul.mubr.f32.gmra.mrb[0].mxu0 %v868
    %v994 = vpop.f32.mrb[0].mxu0
    %v995 = vadd.f32 0.0, %v994
    %v996 = vpop.f32.mrb[0].mxu0
    %997 = vmatprep.mubr.f32.mxu0 0.0
    %998 = vmatmul.mubr.f32.gmra.mrb[0].mxu0 %v869
    %v999 = vpop.f32.mrb[0].mxu0
    %v1000 = vadd.f32 0.0, %v999
    %v1001 = vpop.f32.mrb[0].mxu0
    %1002 = vmatprep.mubr.f32.mxu0 0.0
    %1003 = vmatmul.mubr.f32.gmra.mrb[0].mxu0 %v870
    %v1004 = vpop.f32.mrb[0].mxu0
    %v1005 = vadd.f32 0.0, %v1004
    %v1006 = vpop.f32.mrb[0].mxu0
    %1007 = vmatprep.mubr.f32.mxu0 0.0
    %1008 = vmatmul.mubr.f32.gmra.mrb[0].mxu0 %v871
    %v1009 = vpop.f32.mrb[0].mxu0
    %v1010 = vadd.f32 0.0, %v1009
    %v1011 = vpop.f32.mrb[0].mxu0
    %1012 = vmatprep.mubr.f32.mxu0 0.0
    %1013 = vmatmul.mubr.f32.gmra.mrb[0].mxu0 %v872
    %v1014 = vpop.f32.mrb[0].mxu0
    %v1015 = vadd.f32 0.0, %v1014
    %v1016 = vpop.f32.mrb[0].mxu0
    %1017 = vmatprep.mubr.f32.mxu0 0.0
    %1018 = vmatmul.mubr.f32.gmra.mrb[0].mxu0 %v873
    %v1019 = vpop.f32.mrb[0].mxu0
    %v1020 = vadd.f32 0.0, %v1019
    %v1021 = vpop.f32.mrb[0].mxu0
    %1022 = vmatprep.mubr.f32.mxu0 0.0
    %1023 = vmatmul.mubr.f32.gmra.mrb[0].mxu0 %v874
    %v1024 = vpop.f32.mrb[0].mxu0
    %v1025 = vadd.f32 0.0, %v1024
    %v1026 = vpop.f32.mrb[0].mxu0
    %1027 = vmatprep.mubr.f32.mxu0 0.0
    %1028 = vmatmul.mubr.f32.gmra.mrb[0].mxu0 %v875
    %v1029 = vpop.f32.mrb[0].mxu0
    %v1030 = vadd.f32 0.0, %v1029
    %v1031 = vpop.f32.mrb[0].mxu0
    %1032 = vmatprep.mubr.f32.mxu0 0.0
    %1033 = vmatmul.mubr.f32.gmra.mrb[0].mxu0 %v876
    %v1034 = vpop.f32.mrb[0].mxu0
    %v1035 = vadd.f32 0.0, %v1034
    %v1036 = vpop.f32.mrb[0].mxu0
    %1037 = vdwg.mxu0
    %v1038 = vld [vmem:[%s7] sm:$0x1]
    %v1040 = vlaneseq
    %v1041 = vshrl.u32 %v1040, 7
    %v1042 = vsub.s32 0, %v1041
    %v1043 = vrot.slane %v1038, %v1042
    %1045 = vmatprep.subr.mxu0 0.0
    %1046 = vmatpush1.msra.mxu0 %v960
    %1047 = vmatprep.subr.mxu0 0.0
    %1048 = vmatpush1.msra.mxu0 %v965
    %1049 = vmatprep.subr.mxu0 0.0
    %1050 = vmatpush1.msra.mxu0 %v970
    %1051 = vmatprep.subr.mxu0 0.0
    %1052 = vmatpush1.msra.mxu0 %v975
    %1053 = vmatprep.subr.mxu0 0.0
    %1054 = vmatpush1.msra.mxu0 %v980
    %1055 = vmatprep.subr.mxu0 0.0
    %1056 = vmatpush1.msra.mxu0 %v985
    %1057 = vmatprep.subr.mxu0 0.0
    %1058 = vmatpush1.msra.mxu0 %v990
    %1059 = vmatprep.subr.mxu0 0.0
    %1060 = vmatpush1.msra.mxu0 %v995
    %1061 = vmatprep.subr.mxu0 0.0
    %1062 = vmatpush1.msra.mxu0 %v1000
    %1063 = vmatprep.subr.mxu0 0.0
    %1064 = vmatpush1.msra.mxu0 %v1005
    %1065 = vmatprep.subr.mxu0 0.0
    %1066 = vmatpush1.msra.mxu0 %v1010
    %1067 = vmatprep.subr.mxu0 0.0
    %1068 = vmatpush1.msra.mxu0 %v1015
    %1069 = vmatprep.subr.mxu0 0.0
    %1070 = vmatpush1.msra.mxu0 %v1020
    %1071 = vmatprep.subr.mxu0 0.0
    %1072 = vmatpush1.msra.mxu0 %v1025
    %1073 = vmatprep.subr.mxu0 0.0
    %1074 = vmatpush1.msra.mxu0 %v1030
    %1075 = vmatprep.subr.mxu0 0.0
    %1076 = vmatpush1.msra.mxu0 %v1035
    %1077 = vmatprep.subr.mxu0 0.0
    %1078 = vmatpush1.msra.mxu0 0.0
    %1079 = vmatprep.subr.mxu0 0.0
    %1080 = vmatpush1.msra.mxu0 0.0
    %1081 = vmatprep.subr.mxu0 0.0
    %1082 = vmatpush1.msra.mxu0 0.0
    %1083 = vmatprep.subr.mxu0 0.0
    %1084 = vmatpush1.msra.mxu0 0.0
    %1085 = vmatprep.subr.mxu0 0.0
    %1086 = vmatpush1.msra.mxu0 0.0
    %1087 = vmatprep.subr.mxu0 0.0
    %1088 = vmatpush1.msra.mxu0 0.0
    %1089 = vmatprep.subr.mxu0 0.0
    %1090 = vmatpush1.msra.mxu0 0.0
    %1091 = vmatprep.subr.mxu0 0.0
    %1092 = vmatpush1.msra.mxu0 0.0
    %1093 = vmatprep.subr.mxu0 0.0
    %1094 = vmatpush1.msra.mxu0 0.0
    %1095 = vmatprep.subr.mxu0 0.0
    %1096 = vmatpush1.msra.mxu0 0.0
    %1097 = vmatprep.subr.mxu0 0.0
    %1098 = vmatpush1.msra.mxu0 0.0
    %1099 = vmatprep.subr.mxu0 0.0
    %1100 = vmatpush1.msra.mxu0 0.0
    %1101 = vmatprep.subr.mxu0 0.0
    %1102 = vmatpush1.msra.mxu0 0.0
    %1103 = vmatprep.subr.mxu0 0.0
    %1104 = vmatpush1.msra.mxu0 0.0
    %1105 = vmatprep.subr.mxu0 0.0
    %1106 = vmatpush1.msra.mxu0 0.0
    %1107 = vmatprep.subr.mxu0 0.0
    %1108 = vmatpush1.msra.mxu0 0.0
    %1109 = vmatprep.mubr.f32.mxu0 0.0
    %1110 = vmatmul.mubr.f32.gmra.mrb[0].mxu0 %v118
    %v1111 = vpop.f32.mrb[0].mxu0
    %v1112 = vadd.f32 %v1043, %v1111
    %v1113 = vpop.f32.mrb[0].mxu0
    %1114 = vmatprep.mubr.f32.mxu0 0.0
    %1115 = vmatmul.mubr.f32.gmra.mrb[0].mxu0 %v119
    %v1116 = vpop.f32.mrb[0].mxu0
    %v1117 = vadd.f32 %v1043, %v1116
    %v1118 = vpop.f32.mrb[0].mxu0
    %1119 = vmatprep.mubr.f32.mxu0 0.0
    %1120 = vmatmul.mubr.f32.gmra.mrb[0].mxu0 %v120
    %v1121 = vpop.f32.mrb[0].mxu0
    %v1122 = vadd.f32 %v1043, %v1121
    %v1123 = vpop.f32.mrb[0].mxu0
    %1124 = vmatprep.mubr.f32.mxu0 0.0
    %1125 = vmatmul.mubr.f32.gmra.mrb[0].mxu0 %v121
    %v1126 = vpop.f32.mrb[0].mxu0
    %v1127 = vadd.f32 %v1043, %v1126
    %v1128 = vpop.f32.mrb[0].mxu0
    %1129 = vmatprep.mubr.f32.mxu0 0.0
    %1130 = vmatmul.mubr.f32.gmra.mrb[0].mxu0 %v122
    %v1131 = vpop.f32.mrb[0].mxu0
    %v1132 = vadd.f32 %v1043, %v1131
    %v1133 = vpop.f32.mrb[0].mxu0
    %1134 = vmatprep.mubr.f32.mxu0 0.0
    %1135 = vmatmul.mubr.f32.gmra.mrb[0].mxu0 %v123
    %v1136 = vpop.f32.mrb[0].mxu0
    %v1137 = vadd.f32 %v1043, %v1136
    %v1138 = vpop.f32.mrb[0].mxu0
    %1139 = vmatprep.mubr.f32.mxu0 0.0
    %1140 = vmatmul.mubr.f32.gmra.mrb[0].mxu0 %v124
    %v1141 = vpop.f32.mrb[0].mxu0
    %v1142 = vadd.f32 %v1043, %v1141
    %v1143 = vpop.f32.mrb[0].mxu0
    %1144 = vmatprep.mubr.f32.mxu0 0.0
    %1145 = vmatmul.mubr.f32.gmra.mrb[0].mxu0 %v125
    %v1146 = vpop.f32.mrb[0].mxu0
    %v1147 = vadd.f32 %v1043, %v1146
    %v1148 = vpop.f32.mrb[0].mxu0
    %1149 = vmatprep.mubr.f32.mxu0 0.0
    %1150 = vmatmul.mubr.f32.gmra.mrb[0].mxu0 %v126
    %v1151 = vpop.f32.mrb[0].mxu0
    %v1152 = vadd.f32 %v1043, %v1151
    %v1153 = vpop.f32.mrb[0].mxu0
    %1154 = vmatprep.mubr.f32.mxu0 0.0
    %1155 = vmatmul.mubr.f32.gmra.mrb[0].mxu0 %v127
    %v1156 = vpop.f32.mrb[0].mxu0
    %v1157 = vadd.f32 %v1043, %v1156
    %v1158 = vpop.f32.mrb[0].mxu0
    %1159 = vmatprep.mubr.f32.mxu0 0.0
    %1160 = vmatmul.mubr.f32.gmra.mrb[0].mxu0 %v128
    %v1161 = vpop.f32.mrb[0].mxu0
    %v1162 = vadd.f32 %v1043, %v1161
    %v1163 = vpop.f32.mrb[0].mxu0
    %1164 = vmatprep.mubr.f32.mxu0 0.0
    %1165 = vmatmul.mubr.f32.gmra.mrb[0].mxu0 %v129
    %v1166 = vpop.f32.mrb[0].mxu0
    %v1167 = vadd.f32 %v1043, %v1166
    %v1168 = vpop.f32.mrb[0].mxu0
    %1169 = vmatprep.mubr.f32.mxu0 0.0
    %1170 = vmatmul.mubr.f32.gmra.mrb[0].mxu0 %v130
    %v1171 = vpop.f32.mrb[0].mxu0
    %v1172 = vadd.f32 %v1043, %v1171
    %v1173 = vpop.f32.mrb[0].mxu0
    %1174 = vmatprep.mubr.f32.mxu0 0.0
    %1175 = vmatmul.mubr.f32.gmra.mrb[0].mxu0 %v131
    %v1176 = vpop.f32.mrb[0].mxu0
    %v1177 = vadd.f32 %v1043, %v1176
    %v1178 = vpop.f32.mrb[0].mxu0
    %1179 = vmatprep.mubr.f32.mxu0 0.0
    %1180 = vmatmul.mubr.f32.gmra.mrb[0].mxu0 %v132
    %v1181 = vpop.f32.mrb[0].mxu0
    %v1182 = vadd.f32 %v1043, %v1181
    %v1183 = vpop.f32.mrb[0].mxu0
    %1184 = vmatprep.mubr.f32.mxu0 0.0
    %1185 = vmatmul.mubr.f32.gmra.mrb[0].mxu0 %v133
    %v1186 = vpop.f32.mrb[0].mxu0
    %v1187 = vadd.f32 %v1043, %v1186
    %v1188 = vpop.f32.mrb[0].mxu0
    %1189 = vdwg.mxu0
    %v1190 = vld [vmem:[#allocation11] sm:$0xff]
    %v1191 = vld [vmem:[#allocation11 + $0x8] sm:$0xff]
    %v1192 = vld [vmem:[#allocation11 + $0x10] sm:$0xff]
    %v1193 = vld [vmem:[#allocation11 + $0x18] sm:$0xff]
    %v1194 = vld [vmem:[#allocation11 + $0x20] sm:$0xff]
    %v1195 = vld [vmem:[#allocation11 + $0x28] sm:$0xff]
    %v1196 = vld [vmem:[#allocation11 + $0x30] sm:$0xff]
    %v1197 = vld [vmem:[#allocation11 + $0x38] sm:$0xff]
    %v1198 = vld [vmem:[#allocation11 + $0x40] sm:$0xff]
    %v1199 = vld [vmem:[#allocation11 + $0x48] sm:$0xff]
    %v1200 = vld [vmem:[#allocation11 + $0x50] sm:$0xff]
    %v1201 = vld [vmem:[#allocation11 + $0x58] sm:$0xff]
    %v1202 = vld [vmem:[#allocation11 + $0x60] sm:$0xff]
    %v1203 = vld [vmem:[#allocation11 + $0x68] sm:$0xff]
    %v1204 = vld [vmem:[#allocation11 + $0x70] sm:$0xff]
    %v1205 = vld [vmem:[#allocation11 + $0x78] sm:$0xff]
    %1206 = vmatprep.subr.mxu0 0.0
    %1207 = vmatpush1.msra.mxu0 %v1190
    %1208 = vmatprep.subr.mxu0 0.0
    %1209 = vmatpush1.msra.mxu0 %v1191
    %1210 = vmatprep.subr.mxu0 0.0
    %1211 = vmatpush1.msra.mxu0 %v1192
    %1212 = vmatprep.subr.mxu0 0.0
    %1213 = vmatpush1.msra.mxu0 %v1193
    %1214 = vmatprep.subr.mxu0 0.0
    %1215 = vmatpush1.msra.mxu0 %v1194
    %1216 = vmatprep.subr.mxu0 0.0
    %1217 = vmatpush1.msra.mxu0 %v1195
    %1218 = vmatprep.subr.mxu0 0.0
    %1219 = vmatpush1.msra.mxu0 %v1196
    %1220 = vmatprep.subr.mxu0 0.0
    %1221 = vmatpush1.msra.mxu0 %v1197
    %1222 = vmatprep.subr.mxu0 0.0
    %1223 = vmatpush1.msra.mxu0 %v1198
    %1224 = vmatprep.subr.mxu0 0.0
    %1225 = vmatpush1.msra.mxu0 %v1199
    %1226 = vmatprep.subr.mxu0 0.0
    %1227 = vmatpush1.msra.mxu0 %v1200
    %1228 = vmatprep.subr.mxu0 0.0
    %1229 = vmatpush1.msra.mxu0 %v1201
    %1230 = vmatprep.subr.mxu0 0.0
    %1231 = vmatpush1.msra.mxu0 %v1202
    %1232 = vmatprep.subr.mxu0 0.0
    %1233 = vmatpush1.msra.mxu0 %v1203
    %1234 = vmatprep.subr.mxu0 0.0
    %1235 = vmatpush1.msra.mxu0 %v1204
    %1236 = vmatprep.subr.mxu0 0.0
    %1237 = vmatpush1.msra.mxu0 %v1205
    %1238 = vmatprep.subr.mxu0 0.0
    %1239 = vmatpush1.msra.mxu0 0.0
    %1240 = vmatprep.subr.mxu0 0.0
    %1241 = vmatpush1.msra.mxu0 0.0
    %1242 = vmatprep.subr.mxu0 0.0
    %1243 = vmatpush1.msra.mxu0 0.0
    %1244 = vmatprep.subr.mxu0 0.0
    %1245 = vmatpush1.msra.mxu0 0.0
    %1246 = vmatprep.subr.mxu0 0.0
    %1247 = vmatpush1.msra.mxu0 0.0
    %1248 = vmatprep.subr.mxu0 0.0
    %1249 = vmatpush1.msra.mxu0 0.0
    %1250 = vmatprep.subr.mxu0 0.0
    %1251 = vmatpush1.msra.mxu0 0.0
    %1252 = vmatprep.subr.mxu0 0.0
    %1253 = vmatpush1.msra.mxu0 0.0
    %1254 = vmatprep.subr.mxu0 0.0
    %1255 = vmatpush1.msra.mxu0 0.0
    %1256 = vmatprep.subr.mxu0 0.0
    %1257 = vmatpush1.msra.mxu0 0.0
    %1258 = vmatprep.subr.mxu0 0.0
    %1259 = vmatpush1.msra.mxu0 0.0
    %1260 = vmatprep.subr.mxu0 0.0
    %1261 = vmatpush1.msra.mxu0 0.0
    %1262 = vmatprep.subr.mxu0 0.0
    %1263 = vmatpush1.msra.mxu0 0.0
    %1264 = vmatprep.subr.mxu0 0.0
    %1265 = vmatpush1.msra.mxu0 0.0
    %1266 = vmatprep.subr.mxu0 0.0
    %1267 = vmatpush1.msra.mxu0 0.0
    %1268 = vmatprep.subr.mxu0 0.0
    %1269 = vmatpush1.msra.mxu0 0.0
    %1270 = vmatprep.mubr.f32.mxu0 0.0
    %1271 = vmatmul.mubr.f32.gmra.mrb[0].mxu0 %v1112
    %v1272 = vpop.f32.mrb[0].mxu0
    %v1273 = vadd.f32 0.0, %v1272
    %v1274 = vpop.f32.mrb[0].mxu0
    %1275 = vmatprep.mubr.f32.mxu0 0.0
    %1276 = vmatmul.mubr.f32.gmra.mrb[0].mxu0 %v1117
    %v1277 = vpop.f32.mrb[0].mxu0
    %v1278 = vadd.f32 0.0, %v1277
    %v1279 = vpop.f32.mrb[0].mxu0
    %1280 = vmatprep.mubr.f32.mxu0 0.0
    %1281 = vmatmul.mubr.f32.gmra.mrb[0].mxu0 %v1122
    %v1282 = vpop.f32.mrb[0].mxu0
    %v1283 = vadd.f32 0.0, %v1282
    %v1284 = vpop.f32.mrb[0].mxu0
    %1285 = vmatprep.mubr.f32.mxu0 0.0
    %1286 = vmatmul.mubr.f32.gmra.mrb[0].mxu0 %v1127
    %v1287 = vpop.f32.mrb[0].mxu0
    %v1288 = vadd.f32 0.0, %v1287
    %v1289 = vpop.f32.mrb[0].mxu0
    %1290 = vmatprep.mubr.f32.mxu0 0.0
    %1291 = vmatmul.mubr.f32.gmra.mrb[0].mxu0 %v1132
    %v1292 = vpop.f32.mrb[0].mxu0
    %v1293 = vadd.f32 0.0, %v1292
    %v1294 = vpop.f32.mrb[0].mxu0
    %1295 = vmatprep.mubr.f32.mxu0 0.0
    %1296 = vmatmul.mubr.f32.gmra.mrb[0].mxu0 %v1137
    %v1297 = vpop.f32.mrb[0].mxu0
    %v1298 = vadd.f32 0.0, %v1297
    %v1299 = vpop.f32.mrb[0].mxu0
    %1300 = vmatprep.mubr.f32.mxu0 0.0
    %1301 = vmatmul.mubr.f32.gmra.mrb[0].mxu0 %v1142
    %v1302 = vpop.f32.mrb[0].mxu0
    %v1303 = vadd.f32 0.0, %v1302
    %v1304 = vpop.f32.mrb[0].mxu0
    %1305 = vmatprep.mubr.f32.mxu0 0.0
    %1306 = vmatmul.mubr.f32.gmra.mrb[0].mxu0 %v1147
    %v1307 = vpop.f32.mrb[0].mxu0
    %v1308 = vadd.f32 0.0, %v1307
    %v1309 = vpop.f32.mrb[0].mxu0
    %1310 = vmatprep.mubr.f32.mxu0 0.0
    %1311 = vmatmul.mubr.f32.gmra.mrb[0].mxu0 %v1152
    %v1312 = vpop.f32.mrb[0].mxu0
    %v1313 = vadd.f32 0.0, %v1312
    %v1314 = vpop.f32.mrb[0].mxu0
    %1315 = vmatprep.mubr.f32.mxu0 0.0
    %1316 = vmatmul.mubr.f32.gmra.mrb[0].mxu0 %v1157
    %v1317 = vpop.f32.mrb[0].mxu0
    %v1318 = vadd.f32 0.0, %v1317
    %v1319 = vpop.f32.mrb[0].mxu0
    %1320 = vmatprep.mubr.f32.mxu0 0.0
    %1321 = vmatmul.mubr.f32.gmra.mrb[0].mxu0 %v1162
    %v1322 = vpop.f32.mrb[0].mxu0
    %v1323 = vadd.f32 0.0, %v1322
    %v1324 = vpop.f32.mrb[0].mxu0
    %1325 = vmatprep.mubr.f32.mxu0 0.0
    %1326 = vmatmul.mubr.f32.gmra.mrb[0].mxu0 %v1167
    %v1327 = vpop.f32.mrb[0].mxu0
    %v1328 = vadd.f32 0.0, %v1327
    %v1329 = vpop.f32.mrb[0].mxu0
    %1330 = vmatprep.mubr.f32.mxu0 0.0
    %1331 = vmatmul.mubr.f32.gmra.mrb[0].mxu0 %v1172
    %v1332 = vpop.f32.mrb[0].mxu0
    %v1333 = vadd.f32 0.0, %v1332
    %v1334 = vpop.f32.mrb[0].mxu0
    %1335 = vmatprep.mubr.f32.mxu0 0.0
    %1336 = vmatmul.mubr.f32.gmra.mrb[0].mxu0 %v1177
    %v1337 = vpop.f32.mrb[0].mxu0
    %v1338 = vadd.f32 0.0, %v1337
    %v1339 = vpop.f32.mrb[0].mxu0
    %1340 = vmatprep.mubr.f32.mxu0 0.0
    %1341 = vmatmul.mubr.f32.gmra.mrb[0].mxu0 %v1182
    %v1342 = vpop.f32.mrb[0].mxu0
    %v1343 = vadd.f32 0.0, %v1342
    %v1344 = vpop.f32.mrb[0].mxu0
    %1345 = vmatprep.mubr.f32.mxu0 0.0
    %1346 = vmatmul.mubr.f32.gmra.mrb[0].mxu0 %v1187
    %v1347 = vpop.f32.mrb[0].mxu0
    %v1348 = vadd.f32 0.0, %v1347
    %v1349 = vpop.f32.mrb[0].mxu0
    %1350 = vdwg.mxu0
    %v1351 = vld [vmem:[%s9] sm:$0x1]
    %v1353 = vlaneseq
    %v1354 = vshrl.u32 %v1353, 7
    %v1355 = vsub.s32 0, %v1354
    %v1356 = vrot.slane %v1351, %v1355
    %1358 = vmatprep.subr.mxu0 0.0
    %1359 = vmatpush1.msra.mxu0 %v1273
    %1360 = vmatprep.subr.mxu0 0.0
    %1361 = vmatpush1.msra.mxu0 %v1278
    %1362 = vmatprep.subr.mxu0 0.0
    %1363 = vmatpush1.msra.mxu0 %v1283
    %1364 = vmatprep.subr.mxu0 0.0
    %1365 = vmatpush1.msra.mxu0 %v1288
    %1366 = vmatprep.subr.mxu0 0.0
    %1367 = vmatpush1.msra.mxu0 %v1293
    %1368 = vmatprep.subr.mxu0 0.0
    %1369 = vmatpush1.msra.mxu0 %v1298
    %1370 = vmatprep.subr.mxu0 0.0
    %1371 = vmatpush1.msra.mxu0 %v1303
    %1372 = vmatprep.subr.mxu0 0.0
    %1373 = vmatpush1.msra.mxu0 %v1308
    %1374 = vmatprep.subr.mxu0 0.0
    %1375 = vmatpush1.msra.mxu0 %v1313
    %1376 = vmatprep.subr.mxu0 0.0
    %1377 = vmatpush1.msra.mxu0 %v1318
    %1378 = vmatprep.subr.mxu0 0.0
    %1379 = vmatpush1.msra.mxu0 %v1323
    %1380 = vmatprep.subr.mxu0 0.0
    %1381 = vmatpush1.msra.mxu0 %v1328
    %1382 = vmatprep.subr.mxu0 0.0
    %1383 = vmatpush1.msra.mxu0 %v1333
    %1384 = vmatprep.subr.mxu0 0.0
    %1385 = vmatpush1.msra.mxu0 %v1338
    %1386 = vmatprep.subr.mxu0 0.0
    %1387 = vmatpush1.msra.mxu0 %v1343
    %1388 = vmatprep.subr.mxu0 0.0
    %1389 = vmatpush1.msra.mxu0 %v1348
    %1390 = vmatprep.subr.mxu0 0.0
    %1391 = vmatpush1.msra.mxu0 0.0
    %1392 = vmatprep.subr.mxu0 0.0
    %1393 = vmatpush1.msra.mxu0 0.0
    %1394 = vmatprep.subr.mxu0 0.0
    %1395 = vmatpush1.msra.mxu0 0.0
    %1396 = vmatprep.subr.mxu0 0.0
    %1397 = vmatpush1.msra.mxu0 0.0
    %1398 = vmatprep.subr.mxu0 0.0
    %1399 = vmatpush1.msra.mxu0 0.0
    %1400 = vmatprep.subr.mxu0 0.0
    %1401 = vmatpush1.msra.mxu0 0.0
    %1402 = vmatprep.subr.mxu0 0.0
    %1403 = vmatpush1.msra.mxu0 0.0
    %1404 = vmatprep.subr.mxu0 0.0
    %1405 = vmatpush1.msra.mxu0 0.0
    %1406 = vmatprep.subr.mxu0 0.0
    %1407 = vmatpush1.msra.mxu0 0.0
    %1408 = vmatprep.subr.mxu0 0.0
    %1409 = vmatpush1.msra.mxu0 0.0
    %1410 = vmatprep.subr.mxu0 0.0
    %1411 = vmatpush1.msra.mxu0 0.0
    %1412 = vmatprep.subr.mxu0 0.0
    %1413 = vmatpush1.msra.mxu0 0.0
    %1414 = vmatprep.subr.mxu0 0.0
    %1415 = vmatpush1.msra.mxu0 0.0
    %1416 = vmatprep.subr.mxu0 0.0
    %1417 = vmatpush1.msra.mxu0 0.0
    %1418 = vmatprep.subr.mxu0 0.0
    %1419 = vmatpush1.msra.mxu0 0.0
    %1420 = vmatprep.subr.mxu0 0.0
    %1421 = vmatpush1.msra.mxu0 0.0
    %1422 = vmatprep.mubr.f32.mxu0 0.0
    %1423 = vmatmul.mubr.f32.gmra.mrb[0].mxu0 %v118
    %v1424 = vpop.f32.mrb[0].mxu0
    %v1425 = vadd.f32 %v1356, %v1424
    %v1426 = vpop.f32.mrb[0].mxu0
    %1427 = vmatprep.mubr.f32.mxu0 0.0
    %1428 = vmatmul.mubr.f32.gmra.mrb[0].mxu0 %v119
    %v1429 = vpop.f32.mrb[0].mxu0
    %v1430 = vadd.f32 %v1356, %v1429
    %v1431 = vpop.f32.mrb[0].mxu0
    %1432 = vmatprep.mubr.f32.mxu0 0.0
    %1433 = vmatmul.mubr.f32.gmra.mrb[0].mxu0 %v120
    %v1434 = vpop.f32.mrb[0].mxu0
    %v1435 = vadd.f32 %v1356, %v1434
    %v1436 = vpop.f32.mrb[0].mxu0
    %1437 = vmatprep.mubr.f32.mxu0 0.0
    %1438 = vmatmul.mubr.f32.gmra.mrb[0].mxu0 %v121
    %v1439 = vpop.f32.mrb[0].mxu0
    %v1440 = vadd.f32 %v1356, %v1439
    %v1441 = vpop.f32.mrb[0].mxu0
    %1442 = vmatprep.mubr.f32.mxu0 0.0
    %1443 = vmatmul.mubr.f32.gmra.mrb[0].mxu0 %v122
    %v1444 = vpop.f32.mrb[0].mxu0
    %v1445 = vadd.f32 %v1356, %v1444
    %v1446 = vpop.f32.mrb[0].mxu0
    %1447 = vmatprep.mubr.f32.mxu0 0.0
    %1448 = vmatmul.mubr.f32.gmra.mrb[0].mxu0 %v123
    %v1449 = vpop.f32.mrb[0].mxu0
    %v1450 = vadd.f32 %v1356, %v1449
    %v1451 = vpop.f32.mrb[0].mxu0
    %1452 = vmatprep.mubr.f32.mxu0 0.0
    %1453 = vmatmul.mubr.f32.gmra.mrb[0].mxu0 %v124
    %v1454 = vpop.f32.mrb[0].mxu0
    %v1455 = vadd.f32 %v1356, %v1454
    %v1456 = vpop.f32.mrb[0].mxu0
    %1457 = vmatprep.mubr.f32.mxu0 0.0
    %1458 = vmatmul.mubr.f32.gmra.mrb[0].mxu0 %v125
    %v1459 = vpop.f32.mrb[0].mxu0
    %v1460 = vadd.f32 %v1356, %v1459
    %v1461 = vpop.f32.mrb[0].mxu0
    %1462 = vmatprep.mubr.f32.mxu0 0.0
    %1463 = vmatmul.mubr.f32.gmra.mrb[0].mxu0 %v126
    %v1464 = vpop.f32.mrb[0].mxu0
    %v1465 = vadd.f32 %v1356, %v1464
    %v1466 = vpop.f32.mrb[0].mxu0
    %1467 = vmatprep.mubr.f32.mxu0 0.0
    %1468 = vmatmul.mubr.f32.gmra.mrb[0].mxu0 %v127
    %v1469 = vpop.f32.mrb[0].mxu0
    %v1470 = vadd.f32 %v1356, %v1469
    %v1471 = vpop.f32.mrb[0].mxu0
    %1472 = vmatprep.mubr.f32.mxu0 0.0
    %1473 = vmatmul.mubr.f32.gmra.mrb[0].mxu0 %v128
    %v1474 = vpop.f32.mrb[0].mxu0
    %v1475 = vadd.f32 %v1356, %v1474
    %v1476 = vpop.f32.mrb[0].mxu0
    %1477 = vmatprep.mubr.f32.mxu0 0.0
    %1478 = vmatmul.mubr.f32.gmra.mrb[0].mxu0 %v129
    %v1479 = vpop.f32.mrb[0].mxu0
    %v1480 = vadd.f32 %v1356, %v1479
    %v1481 = vpop.f32.mrb[0].mxu0
    %1482 = vmatprep.mubr.f32.mxu0 0.0
    %1483 = vmatmul.mubr.f32.gmra.mrb[0].mxu0 %v130
    %v1484 = vpop.f32.mrb[0].mxu0
    %v1485 = vadd.f32 %v1356, %v1484
    %v1486 = vpop.f32.mrb[0].mxu0
    %1487 = vmatprep.mubr.f32.mxu0 0.0
    %1488 = vmatmul.mubr.f32.gmra.mrb[0].mxu0 %v131
    %v1489 = vpop.f32.mrb[0].mxu0
    %v1490 = vadd.f32 %v1356, %v1489
    %v1491 = vpop.f32.mrb[0].mxu0
    %1492 = vmatprep.mubr.f32.mxu0 0.0
    %1493 = vmatmul.mubr.f32.gmra.mrb[0].mxu0 %v132
    %v1494 = vpop.f32.mrb[0].mxu0
    %v1495 = vadd.f32 %v1356, %v1494
    %v1496 = vpop.f32.mrb[0].mxu0
    %1497 = vmatprep.mubr.f32.mxu0 0.0
    %1498 = vmatmul.mubr.f32.gmra.mrb[0].mxu0 %v133
    %v1499 = vpop.f32.mrb[0].mxu0
    %v1500 = vadd.f32 %v1356, %v1499
    %v1501 = vpop.f32.mrb[0].mxu0
    %1502 = vdwg.mxu0
    %1503 = vst [vmem:[#allocation13] sm:$0xff] %v1425
    %1504 = vst [vmem:[#allocation13 + $0x8] sm:$0xff] %v1430
    %1505 = vst [vmem:[#allocation13 + $0x10] sm:$0xff] %v1435
    %1506 = vst [vmem:[#allocation13 + $0x18] sm:$0xff] %v1440
    %1507 = vst [vmem:[#allocation13 + $0x20] sm:$0xff] %v1445
    %1508 = vst [vmem:[#allocation13 + $0x28] sm:$0xff] %v1450
    %1509 = vst [vmem:[#allocation13 + $0x30] sm:$0xff] %v1455
    %1510 = vst [vmem:[#allocation13 + $0x38] sm:$0xff] %v1460
    %1511 = vst [vmem:[#allocation13 + $0x40] sm:$0xff] %v1465
    %1512 = vst [vmem:[#allocation13 + $0x48] sm:$0xff] %v1470
    %1513 = vst [vmem:[#allocation13 + $0x50] sm:$0xff] %v1475
    %1514 = vst [vmem:[#allocation13 + $0x58] sm:$0xff] %v1480
    %1515 = vst [vmem:[#allocation13 + $0x60] sm:$0xff] %v1485
    %1516 = vst [vmem:[#allocation13 + $0x68] sm:$0xff] %v1490
    %1517 = vst [vmem:[#allocation13 + $0x70] sm:$0xff] %v1495
    %1518 = vst [vmem:[#allocation13 + $0x78] sm:$0xff] %v1500
    // Predicated region
    $region66: #{tpu_custom_call.1} parent=1 // pred_check
      _
    $region67: #{tpu_custom_call.1} parent=1 // pred_check_branch
      %1520 = sbr.rel (0) target = $region69
    $region68: #{tpu_custom_call.1} parent=1 // pred_region
      %s1522 = ssub.s32 2048, 2048
      %1523 = vsyncadd [#allocation4], %s1522
      %s1524 = sshll.u32 [#allocation13], 4
      %s1525 = int_to_ptr.vmem [resolvable:$true] %s1524
      %1530 = dma.vmem_to_hbm [thread:$0]  %s1525, 2048, %s10, [#allocation4], 128, 128, 8
    $region69: #{tpu_custom_call.1} parent=1 // pred_fallthru
      _
    // Predicated region
    $region70: #{tpu_custom_call.1} parent=1 // pred_check
      _
    $region71: #{tpu_custom_call.1} parent=1 // pred_check_branch
      %1532 = sbr.rel (0) target = $region73
    $region72: #{tpu_custom_call.1} parent=1 // pred_region
      %1533 = dma.done [#allocation4], 2048
    $region73: #{tpu_custom_call.1} parent=1 // pred_fallthru
      _
    %1534 = vsyncpa [#allocation3], 1
    %1535 = vsyncpa [#allocation6], 1
    %1536 = vsyncpa [#allocation9], 1
    %1537 = vsyncpa [#allocation12], 1
    %1538 = vsyncpa [#allocation4], 1

</llo_original>
